<compile_context>
chip_gen: v5e
topology: v5e:2x2
jax: 0.10.0
libtpu: 0.0.40
codegen_flags: <defaults>
</compile_context>

<pallas_src>
import functools

import jax
import jax.numpy as jnp
from jax.experimental import pallas as pl
from jax.experimental.pallas import tpu as pltpu


def self_attention_kernel(
    x_ref,        # (Lb, N, D)   activation dtype (bf16 by default)
    wqkv_ref,     # (D, 3D)      fused + pre-transposed Q/K/V weight (mxu dtype)
    bqkv_ref,     # (1, 3D)      fused Q/K/V bias (f32)
    wo_ref,       # (D, D)       pre-transposed out_proj weight (mxu dtype)
    w1_ref,       # (D, F)       pre-transposed FFN weight 1 (mxu dtype)
    b1_ref,       # (1, F)       f32
    w2_ref,       # (F, D)       pre-transposed FFN weight 2 (mxu dtype)
    vecs_ref,     # (6, D)       rows: [bo, g1, be1, b2, g2, be2] (f32)
    o_ref,        # (Lb, N, D)   activation dtype
    *, num_heads, mask, eps=1e-5, mxu_dtype=jnp.bfloat16,
):
    Lb, N, D = x_ref.shape
    H = num_heads
    hd = D // H
    scale = 1.0 / (hd ** 0.5)

    def mm(a, b):
        # MXU matmul; bf16 operands by default, accumulate in f32.
        return jnp.dot(a.astype(mxu_dtype), b.astype(mxu_dtype),
                       preferred_element_type=jnp.float32)

    def bmm(eq, a, b):
        # Single-batch-dim einsum (same pattern as the flash-attention kernel).
        return jnp.einsum(eq, a.astype(mxu_dtype), b.astype(mxu_dtype),
                          preferred_element_type=jnp.float32)

    def layer_norm(a, g, b):
        # One-pass mean/variance: E[x], E[x^2].
        mu = jnp.mean(a, axis=-1, keepdims=True)
        ms = jnp.mean(a * a, axis=-1, keepdims=True)
        var = ms - mu * mu
        return (a - mu) * jax.lax.rsqrt(var + eps) * g + b

    x2 = x_ref[...].reshape(Lb * N, D)             # bf16 rows, M = Lb*N
    x_f = x2.astype(jnp.float32)                   # residual path in f32

    # --- fused QKV projection (weights pre-transposed host-side) ---
    qkv = mm(x2, wqkv_ref[...]) + bqkv_ref[...]    # (M, 3D) f32
    q = qkv[:, 0 * D:1 * D].reshape(Lb, N, D) * scale   # scale folded into q
    k = qkv[:, 1 * D:2 * D].reshape(Lb, N, D)
    v = qkv[:, 2 * D:3 * D].reshape(Lb, N, D)

    # --- causal mask built once as (1, N, N); broadcast over Lb ---
    if mask:
        row = jax.lax.broadcasted_iota(jnp.int32, (1, N, N), 1)
        col = jax.lax.broadcasted_iota(jnp.int32, (1, N, N), 2)
        causal = col <= row

    # --- multi-head attention, batched over Lb per head ---
    head_outs = []
    for h in range(H):
        sl = slice(h * hd, (h + 1) * hd)
        qh, kh, vh = q[:, :, sl], k[:, :, sl], v[:, :, sl]
        s = bmm('lnd,lmd->lnm', qh, kh)            # (Lb, N, N) f32
        if mask:
            s = jnp.where(causal, s, -jnp.inf)
        s = s - jnp.max(s, axis=-1, keepdims=True)
        e = jnp.exp(s)
        p = e * pl.reciprocal(jnp.sum(e, axis=-1, keepdims=True), approx=True)
        head_outs.append(bmm('lnm,lmd->lnd', p, vh))
    attn = jnp.concatenate(head_outs, axis=-1).reshape(Lb * N, D)

    vecs = vecs_ref[...]                           # (6, D) f32
    bo, g1, be1 = vecs[0:1], vecs[1:2], vecs[2:3]
    b2, g2, be2 = vecs[3:4], vecs[4:5], vecs[5:6]

    # --- output projection + residual + LayerNorm 1 ---
    y = layer_norm(x_f + mm(attn, wo_ref[...]) + bo, g1, be1)

    # --- feed forward + residual + LayerNorm 2 ---
    hdn = jnp.maximum(mm(y, w1_ref[...]) + b1_ref[...], 0.0)
    z = layer_norm(y + mm(hdn, w2_ref[...]) + b2, g2, be2)

    o_ref[...] = z.reshape(Lb, N, D).astype(o_ref.dtype)


def _estimate_vmem_bytes(lb, N, D, F, H, act_bytes=2, w_bytes=2):
    """Conservative live-VMEM estimate for one grid step."""
    rows = lb * N
    # Pipelined (double-buffered) in/out activation blocks.
    io = 2 * 2 * rows * D * act_bytes
    # Resident weights; BlockSpec double-buffers every input -> x2.
    w_mxu = 3 * D * D + D * D + D * F + F * D          # matmul weights (w_bytes)
    w_vec = 3 * D + F + 6 * D                          # bias/gain vectors (f32)
    weights = 2 * (w_mxu * w_bytes + w_vec * 4)
    # f32 in-kernel temporaries, counting the unrolled head loop H deep.
    tmp = 4 * (rows * D                 # x upcast
               + rows * 3 * D           # fused qkv
               + 3 * rows * D           # q, k, v
               + 2 * H * lb * N * N     # scores + exp across unrolled heads
               + rows * D               # head outputs
               + 3 * rows * D           # attn / y / z
               + rows * F)              # ffn hidden
    return io + weights + tmp


def _choose_block_l(L, N, D, F, H, *, target_rows=512,
                    vmem_budget_bytes=24 << 20):
    """Pick Lb (a divisor of L).  Preference order:
       1) grid >= 4 steps and even (pipelining + both v7x TCs busy),
       2) grid >= 4, 3) grid >= 2, 4) anything that fits.
       Within a tier, the largest Lb with rows <= target_rows and an
       estimated live VMEM footprint under the budget wins."""
    divisors = [lb for lb in range(L, 0, -1) if L % lb == 0]

    def fits(lb):
        return (lb * N <= target_rows
                and _estimate_vmem_bytes(lb, N, D, F, H) <= vmem_budget_bytes)

    tiers = (lambda g: g >= 4 and g % 2 == 0,
             lambda g: g >= 4,
             lambda g: g >= 2,
             lambda g: True)
    for tier in tiers:
        for lb in divisors:
            if tier(L // lb) and fits(lb):
                return lb
    return 1


def self_attention_layer(x, params, *, num_heads, mask=False, dim=-2,
                         target_rows=512, mxu_dtype=jnp.bfloat16,
                         activation_dtype=jnp.bfloat16):
    """x: (B, T, N, D). Attention is performed across the axis `dim`."""
    orig_dtype = x.dtype
    x = jnp.swapaxes(x, dim, -2)
    B, T, N, D = x.shape
    L = B * T
    xf = x.reshape(L, N, D).astype(activation_dtype)
    F_dim = params['w1'].shape[0]

    # Host-side (trace-time) weight packing: fuse QKV, pre-transpose all
    # matmul weights (stored in the MXU dtype), pack small vectors.
    wqkv_t = jnp.concatenate(
        [params['wq'].T, params['wk'].T, params['wv'].T], axis=1
    ).astype(mxu_dtype)                                                  # (D, 3D)
    bqkv = jnp.concatenate(
        [params['bq'], params['bk'], params['bv']], axis=1)             # (1, 3D) f32
    wo_t = params['wo'].T.astype(mxu_dtype)                             # (D, D)
    w1_t = params['w1'].T.astype(mxu_dtype)                             # (D, F)
    w2_t = params['w2'].T.astype(mxu_dtype)                             # (F, D)
    b1 = params['b1']                                                   # (1, F) f32
    vecs = jnp.concatenate(
        [params['bo'], params['g1'], params['be1'],
         params['b2'], params['g2'], params['be2']], axis=0)            # (6, D) f32

    weights = [wqkv_t, bqkv, wo_t, w1_t, b1, w2_t, vecs]

    Lb = _choose_block_l(L, N, D, F_dim, num_heads, target_rows=target_rows)

    def full_spec(arr):
        nd = arr.ndim
        return pl.BlockSpec(arr.shape, lambda i, _nd=nd: (0,) * _nd)

    in_specs = [pl.BlockSpec((Lb, N, D), lambda i: (i, 0, 0))]
    in_specs += [full_spec(w) for w in weights]

    kernel = functools.partial(self_attention_kernel, num_heads=num_heads,
                               mask=mask, mxu_dtype=mxu_dtype)

    out = pl.pallas_call(
        kernel,
        out_shape=jax.ShapeDtypeStruct((L, N, D), activation_dtype),
        grid_spec=pltpu.PrefetchScalarGridSpec(
            num_scalar_prefetch=0,
            grid=(L // Lb,),
            in_specs=in_specs,
            out_specs=pl.BlockSpec((Lb, N, D), lambda i: (i, 0, 0)),
        ),
        compiler_params=pltpu.CompilerParams(
            # Steps are independent -> shard across v7x's 2 TensorCores.
            dimension_semantics=("parallel",),
            # 32 MiB scoped VMEM: raises v5e's 16 MiB default, matches the
            # v6e/v7x defaults, and stays under every generation's physical
            # VMEM (v7x 64 MiB, v5e/v6e 128 MiB).
            vmem_limit_bytes=32 * 1024 * 1024,
        ),
    )(xf, *weights)

    out = out.reshape(B, T, N, D).astype(orig_dtype)
    return jnp.swapaxes(out, dim, -2)


def reference_self_attention_layer(x, params, *, num_heads, mask=False, dim=-2,
                                   eps=1e-5):
    """Pure-JAX (f32) reference matching the PyTorch forward exactly."""
    x = jnp.swapaxes(x, dim, -2)
    B, T, N, D = x.shape
    hd = D // num_heads

    def lin(a, w, b):
        return a @ w.T + b

    q = lin(x, params['wq'], params['bq']).reshape(B, T, N, num_heads, hd)
    k = lin(x, params['wk'], params['bk']).reshape(B, T, N, num_heads, hd)
    v = lin(x, params['wv'], params['bv']).reshape(B, T, N, num_heads, hd)
    s = jnp.einsum('btnhd,btmhd->bthnm', q, k) / (hd ** 0.5)
    if mask:
        tri = jnp.tril(jnp.ones((N, N), dtype=bool))
        s = jnp.where(tri, s, -jnp.inf)
    p = jax.nn.softmax(s, axis=-1)
    o = jnp.einsum('bthnm,btmhd->btnhd', p, v).reshape(B, T, N, D)
    o = lin(o, params['wo'], params['bo'])

    def layer_norm(a, g, b):
        mu = jnp.mean(a, axis=-1, keepdims=True)
        var = jnp.mean((a - mu) ** 2, axis=-1, keepdims=True)
        return (a - mu) * jax.lax.rsqrt(var + eps) * g + b

    y = layer_norm(x + o, params['g1'], params['be1'])
    ff = lin(jnp.maximum(lin(y, params['w1'], params['b1']), 0.0),
             params['w2'], params['b2'])
    z = layer_norm(y + ff, params['g2'], params['be2'])
    return jnp.swapaxes(z, dim, -2)


def init_params(key, model_dim, feed_forward_dim):
    ks = jax.random.split(key, 10)
    D, F = model_dim, feed_forward_dim
    scale = 0.1

    def w(k, shape):
        return (scale * jax.random.normal(k, shape)).astype(jnp.float32)

    return {
        'wq': w(ks[0], (D, D)), 'bq': w(ks[1], (1, D)),
        'wk': w(ks[2], (D, D)), 'bk': w(ks[3], (1, D)),
        'wv': w(ks[4], (D, D)), 'bv': w(ks[5], (1, D)),
        'wo': w(ks[6], (D, D)), 'bo': w(ks[7], (1, D)),
        'g1': jnp.ones((1, D), jnp.float32), 'be1': jnp.zeros((1, D), jnp.float32),
        'w1': w(ks[8], (F, D)), 'b1': jnp.zeros((1, F), jnp.float32),
        'w2': w(ks[9], (D, F)), 'b2': jnp.zeros((1, D), jnp.float32),
        'g2': jnp.ones((1, D), jnp.float32), 'be2': jnp.zeros((1, D), jnp.float32),
    }


if __name__ == "__main__":
    # Small shapes consistent with the module's (batch, in_steps, num_nodes, model_dim).
    B, T, N, D = 2, 8, 16, 32
    NUM_HEADS = 4
    FF_DIM = 64

    key = jax.random.PRNGKey(0)
    kx, kp = jax.random.split(key)
    x = jax.random.normal(kx, (B, T, N, D), dtype=jnp.float32)
    params = init_params(kp, D, FF_DIM)

    out = self_attention_layer(x, params, num_heads=NUM_HEADS, mask=False, dim=-2)
    out = jax.block_until_ready(out)

    ref = reference_self_attention_layer(x, params, num_heads=NUM_HEADS,
                                         mask=False, dim=-2)
    assert out.shape == (B, T, N, D)
    # Tolerance accounts for bf16 activation streaming, bf16 MXU operands
    # (f32 accumulation), and the EUP approximate softmax reciprocal.
    assert jnp.allclose(out, ref, atol=3e-2, rtol=3e-2), "mismatch vs JAX reference"

    print("KERNEL_OK")
</pallas_src>

<mosaic_0001>
module attributes {stable_mosaic.version = 11 : i64} {
  func.func @self_attention_kernel(%arg0: i32, %arg1: memref<4x16x32xbf16, #tpu.memory_space<vmem>>, %arg2: memref<32x96xbf16, #tpu.memory_space<vmem>>, %arg3: memref<1x96xf32, #tpu.memory_space<vmem>>, %arg4: memref<32x32xbf16, #tpu.memory_space<vmem>>, %arg5: memref<32x64xbf16, #tpu.memory_space<vmem>>, %arg6: memref<1x64xf32, #tpu.memory_space<vmem>>, %arg7: memref<64x32xbf16, #tpu.memory_space<vmem>>, %arg8: memref<6x32xf32, #tpu.memory_space<vmem>>, %arg9: memref<4x16x32xbf16, #tpu.memory_space<vmem>>) attributes {dimension_semantics = [#tpu.dimension_semantics<parallel>], iteration_bounds = array<i64: 4>, scalar_prefetch = 0 : i64, scratch_operands = 0 : i64, tpu.core_type = #tpu.core_type<tc>, window_params = [{transform_indices = @transform_0, window_bounds = array<i64: 4, 16, 32>}, {pipeline_mode = #tpu.pipeline_mode<synchronous>, transform_indices = @transform_1, window_bounds = array<i64: 32, 96>}, {pipeline_mode = #tpu.pipeline_mode<synchronous>, transform_indices = @transform_2, window_bounds = array<i64: 1, 96>}, {pipeline_mode = #tpu.pipeline_mode<synchronous>, transform_indices = @transform_3, window_bounds = array<i64: 32, 32>}, {pipeline_mode = #tpu.pipeline_mode<synchronous>, transform_indices = @transform_4, window_bounds = array<i64: 32, 64>}, {pipeline_mode = #tpu.pipeline_mode<synchronous>, transform_indices = @transform_5, window_bounds = array<i64: 1, 64>}, {pipeline_mode = #tpu.pipeline_mode<synchronous>, transform_indices = @transform_6, window_bounds = array<i64: 64, 32>}, {pipeline_mode = #tpu.pipeline_mode<synchronous>, transform_indices = @transform_7, window_bounds = array<i64: 6, 32>}, {transform_indices = @transform_8, window_bounds = array<i64: 4, 16, 32>}]} {
    %c0 = arith.constant 0 : index
    %c0_0 = arith.constant 0 : index
    %c0_1 = arith.constant 0 : index
    %0 = vector.load %arg1[%c0, %c0_0, %c0_1] : memref<4x16x32xbf16, #tpu.memory_space<vmem>>, vector<4x16x32xbf16>
    %1 = vector.shape_cast %0 : vector<4x16x32xbf16> to vector<64x32xbf16>
    %2 = arith.extf %1 : vector<64x32xbf16> to vector<64x32xf32>
    %c0_2 = arith.constant 0 : index
    %c0_3 = arith.constant 0 : index
    %3 = vector.load %arg2[%c0_2, %c0_3] : memref<32x96xbf16, #tpu.memory_space<vmem>>, vector<32x96xbf16>
    %cst = arith.constant dense<0.000000e+00> : vector<64x96xf32>
    %4 = tpu.matmul %1, %3, %cst {dimension_numbers = #tpu.dot_dimension_numbers<[1], [0], [0], [1], [0, 0, 1, 1], [], []>} : vector<64x32xbf16>, vector<32x96xbf16>, vector<64x96xf32> -> vector<64x96xf32>
    %c0_4 = arith.constant 0 : index
    %c0_5 = arith.constant 0 : index
    %5 = vector.load %arg3[%c0_4, %c0_5] : memref<1x96xf32, #tpu.memory_space<vmem>>, vector<1x96xf32>
    %6 = vector.broadcast %5 : vector<1x96xf32> to vector<64x96xf32>
    %7 = arith.addf %4, %6 : vector<64x96xf32>
    %8 = vector.extract_strided_slice %7 {offsets = [0, 0], sizes = [64, 32], strides = [1, 1]} : vector<64x96xf32> to vector<64x32xf32>
    %9 = vector.shape_cast %8 : vector<64x32xf32> to vector<4x16x32xf32>
    %cst_6 = arith.constant 0.353553385 : f32
    %10 = vector.broadcast %cst_6 : f32 to vector<4x16x32xf32>
    %11 = arith.mulf %9, %10 : vector<4x16x32xf32>
    %12 = vector.extract_strided_slice %7 {offsets = [0, 32], sizes = [64, 32], strides = [1, 1]} : vector<64x96xf32> to vector<64x32xf32>
    %13 = vector.shape_cast %12 : vector<64x32xf32> to vector<4x16x32xf32>
    %14 = vector.extract_strided_slice %7 {offsets = [0, 64], sizes = [64, 32], strides = [1, 1]} : vector<64x96xf32> to vector<64x32xf32>
    %15 = vector.shape_cast %14 : vector<64x32xf32> to vector<4x16x32xf32>
    %16 = vector.extract_strided_slice %11 {offsets = [0, 0, 0], sizes = [4, 16, 8], strides = [1, 1, 1]} : vector<4x16x32xf32> to vector<4x16x8xf32>
    %17 = vector.extract_strided_slice %13 {offsets = [0, 0, 0], sizes = [4, 16, 8], strides = [1, 1, 1]} : vector<4x16x32xf32> to vector<4x16x8xf32>
    %18 = vector.extract_strided_slice %15 {offsets = [0, 0, 0], sizes = [4, 16, 8], strides = [1, 1, 1]} : vector<4x16x32xf32> to vector<4x16x8xf32>
    %19 = arith.truncf %16 : vector<4x16x8xf32> to vector<4x16x8xbf16>
    %20 = arith.truncf %17 : vector<4x16x8xf32> to vector<4x16x8xbf16>
    "tpu.trace_start"() <{level = 10 : i32, message = "lnd,lmd->lnm"}> : () -> ()
    %cst_7 = arith.constant dense<0.000000e+00> : vector<4x16x16xf32>
    %21 = tpu.matmul %19, %20, %cst_7 {dimension_numbers = #tpu.dot_dimension_numbers<[2], [2], [1], [1], [0, 0, 0, 1, 1, 1], [0], [0]>} : vector<4x16x8xbf16>, vector<4x16x8xbf16>, vector<4x16x16xf32> -> vector<4x16x16xf32>
    "tpu.trace_stop"() : () -> ()
    %cst_8 = arith.constant dense<0xFF800000> : vector<4x16xf32>
    %22 = vector.multi_reduction <maximumf>, %21, %cst_8 [2] : vector<4x16x16xf32> to vector<4x16xf32>
    %23 = vector.shape_cast %22 : vector<4x16xf32> to vector<4x16x1xf32>
    %24 = vector.broadcast %23 : vector<4x16x1xf32> to vector<4x16x16xf32>
    %25 = arith.subf %21, %24 : vector<4x16x16xf32>
    %26 = math.exp %25 : vector<4x16x16xf32>
    %cst_9 = arith.constant dense<0.000000e+00> : vector<4x16xf32>
    %27 = vector.multi_reduction <add>, %26, %cst_9 [2] : vector<4x16x16xf32> to vector<4x16xf32>
    %28 = vector.shape_cast %27 : vector<4x16xf32> to vector<4x16x1xf32>
    %29 = tpu.reciprocal %28 {approx = true} : vector<4x16x1xf32> -> vector<4x16x1xf32>
    %30 = vector.broadcast %29 : vector<4x16x1xf32> to vector<4x16x16xf32>
    %31 = arith.mulf %26, %30 : vector<4x16x16xf32>
    %32 = arith.truncf %31 : vector<4x16x16xf32> to vector<4x16x16xbf16>
    %33 = arith.truncf %18 : vector<4x16x8xf32> to vector<4x16x8xbf16>
    "tpu.trace_start"() <{level = 10 : i32, message = "lnm,lmd->lnd"}> : () -> ()
    %cst_10 = arith.constant dense<0.000000e+00> : vector<4x16x8xf32>
    %34 = tpu.matmul %32, %33, %cst_10 {dimension_numbers = #tpu.dot_dimension_numbers<[2], [1], [1], [2], [0, 0, 0, 1, 1, 2], [0], [0]>} : vector<4x16x16xbf16>, vector<4x16x8xbf16>, vector<4x16x8xf32> -> vector<4x16x8xf32>
    "tpu.trace_stop"() : () -> ()
    %35 = vector.extract_strided_slice %11 {offsets = [0, 0, 8], sizes = [4, 16, 8], strides = [1, 1, 1]} : vector<4x16x32xf32> to vector<4x16x8xf32>
    %36 = vector.extract_strided_slice %13 {offsets = [0, 0, 8], sizes = [4, 16, 8], strides = [1, 1, 1]} : vector<4x16x32xf32> to vector<4x16x8xf32>
    %37 = vector.extract_strided_slice %15 {offsets = [0, 0, 8], sizes = [4, 16, 8], strides = [1, 1, 1]} : vector<4x16x32xf32> to vector<4x16x8xf32>
    %38 = arith.truncf %35 : vector<4x16x8xf32> to vector<4x16x8xbf16>
    %39 = arith.truncf %36 : vector<4x16x8xf32> to vector<4x16x8xbf16>
    "tpu.trace_start"() <{level = 10 : i32, message = "lnd,lmd->lnm"}> : () -> ()
    %cst_11 = arith.constant dense<0.000000e+00> : vector<4x16x16xf32>
    %40 = tpu.matmul %38, %39, %cst_11 {dimension_numbers = #tpu.dot_dimension_numbers<[2], [2], [1], [1], [0, 0, 0, 1, 1, 1], [0], [0]>} : vector<4x16x8xbf16>, vector<4x16x8xbf16>, vector<4x16x16xf32> -> vector<4x16x16xf32>
    "tpu.trace_stop"() : () -> ()
    %cst_12 = arith.constant dense<0xFF800000> : vector<4x16xf32>
    %41 = vector.multi_reduction <maximumf>, %40, %cst_12 [2] : vector<4x16x16xf32> to vector<4x16xf32>
    %42 = vector.shape_cast %41 : vector<4x16xf32> to vector<4x16x1xf32>
    %43 = vector.broadcast %42 : vector<4x16x1xf32> to vector<4x16x16xf32>
    %44 = arith.subf %40, %43 : vector<4x16x16xf32>
    %45 = math.exp %44 : vector<4x16x16xf32>
    %cst_13 = arith.constant dense<0.000000e+00> : vector<4x16xf32>
    %46 = vector.multi_reduction <add>, %45, %cst_13 [2] : vector<4x16x16xf32> to vector<4x16xf32>
    %47 = vector.shape_cast %46 : vector<4x16xf32> to vector<4x16x1xf32>
    %48 = tpu.reciprocal %47 {approx = true} : vector<4x16x1xf32> -> vector<4x16x1xf32>
    %49 = vector.broadcast %48 : vector<4x16x1xf32> to vector<4x16x16xf32>
    %50 = arith.mulf %45, %49 : vector<4x16x16xf32>
    %51 = arith.truncf %50 : vector<4x16x16xf32> to vector<4x16x16xbf16>
    %52 = arith.truncf %37 : vector<4x16x8xf32> to vector<4x16x8xbf16>
    "tpu.trace_start"() <{level = 10 : i32, message = "lnm,lmd->lnd"}> : () -> ()
    %cst_14 = arith.constant dense<0.000000e+00> : vector<4x16x8xf32>
    %53 = tpu.matmul %51, %52, %cst_14 {dimension_numbers = #tpu.dot_dimension_numbers<[2], [1], [1], [2], [0, 0, 0, 1, 1, 2], [0], [0]>} : vector<4x16x16xbf16>, vector<4x16x8xbf16>, vector<4x16x8xf32> -> vector<4x16x8xf32>
    "tpu.trace_stop"() : () -> ()
    %54 = vector.extract_strided_slice %11 {offsets = [0, 0, 16], sizes = [4, 16, 8], strides = [1, 1, 1]} : vector<4x16x32xf32> to vector<4x16x8xf32>
    %55 = vector.extract_strided_slice %13 {offsets = [0, 0, 16], sizes = [4, 16, 8], strides = [1, 1, 1]} : vector<4x16x32xf32> to vector<4x16x8xf32>
    %56 = vector.extract_strided_slice %15 {offsets = [0, 0, 16], sizes = [4, 16, 8], strides = [1, 1, 1]} : vector<4x16x32xf32> to vector<4x16x8xf32>
    %57 = arith.truncf %54 : vector<4x16x8xf32> to vector<4x16x8xbf16>
    %58 = arith.truncf %55 : vector<4x16x8xf32> to vector<4x16x8xbf16>
    "tpu.trace_start"() <{level = 10 : i32, message = "lnd,lmd->lnm"}> : () -> ()
    %cst_15 = arith.constant dense<0.000000e+00> : vector<4x16x16xf32>
    %59 = tpu.matmul %57, %58, %cst_15 {dimension_numbers = #tpu.dot_dimension_numbers<[2], [2], [1], [1], [0, 0, 0, 1, 1, 1], [0], [0]>} : vector<4x16x8xbf16>, vector<4x16x8xbf16>, vector<4x16x16xf32> -> vector<4x16x16xf32>
    "tpu.trace_stop"() : () -> ()
    %cst_16 = arith.constant dense<0xFF800000> : vector<4x16xf32>
    %60 = vector.multi_reduction <maximumf>, %59, %cst_16 [2] : vector<4x16x16xf32> to vector<4x16xf32>
    %61 = vector.shape_cast %60 : vector<4x16xf32> to vector<4x16x1xf32>
    %62 = vector.broadcast %61 : vector<4x16x1xf32> to vector<4x16x16xf32>
    %63 = arith.subf %59, %62 : vector<4x16x16xf32>
    %64 = math.exp %63 : vector<4x16x16xf32>
    %cst_17 = arith.constant dense<0.000000e+00> : vector<4x16xf32>
    %65 = vector.multi_reduction <add>, %64, %cst_17 [2] : vector<4x16x16xf32> to vector<4x16xf32>
    %66 = vector.shape_cast %65 : vector<4x16xf32> to vector<4x16x1xf32>
    %67 = tpu.reciprocal %66 {approx = true} : vector<4x16x1xf32> -> vector<4x16x1xf32>
    %68 = vector.broadcast %67 : vector<4x16x1xf32> to vector<4x16x16xf32>
    %69 = arith.mulf %64, %68 : vector<4x16x16xf32>
    %70 = arith.truncf %69 : vector<4x16x16xf32> to vector<4x16x16xbf16>
    %71 = arith.truncf %56 : vector<4x16x8xf32> to vector<4x16x8xbf16>
    "tpu.trace_start"() <{level = 10 : i32, message = "lnm,lmd->lnd"}> : () -> ()
    %cst_18 = arith.constant dense<0.000000e+00> : vector<4x16x8xf32>
    %72 = tpu.matmul %70, %71, %cst_18 {dimension_numbers = #tpu.dot_dimension_numbers<[2], [1], [1], [2], [0, 0, 0, 1, 1, 2], [0], [0]>} : vector<4x16x16xbf16>, vector<4x16x8xbf16>, vector<4x16x8xf32> -> vector<4x16x8xf32>
    "tpu.trace_stop"() : () -> ()
    %73 = vector.extract_strided_slice %11 {offsets = [0, 0, 24], sizes = [4, 16, 8], strides = [1, 1, 1]} : vector<4x16x32xf32> to vector<4x16x8xf32>
    %74 = vector.extract_strided_slice %13 {offsets = [0, 0, 24], sizes = [4, 16, 8], strides = [1, 1, 1]} : vector<4x16x32xf32> to vector<4x16x8xf32>
    %75 = vector.extract_strided_slice %15 {offsets = [0, 0, 24], sizes = [4, 16, 8], strides = [1, 1, 1]} : vector<4x16x32xf32> to vector<4x16x8xf32>
    %76 = arith.truncf %73 : vector<4x16x8xf32> to vector<4x16x8xbf16>
    %77 = arith.truncf %74 : vector<4x16x8xf32> to vector<4x16x8xbf16>
    "tpu.trace_start"() <{level = 10 : i32, message = "lnd,lmd->lnm"}> : () -> ()
    %cst_19 = arith.constant dense<0.000000e+00> : vector<4x16x16xf32>
    %78 = tpu.matmul %76, %77, %cst_19 {dimension_numbers = #tpu.dot_dimension_numbers<[2], [2], [1], [1], [0, 0, 0, 1, 1, 1], [0], [0]>} : vector<4x16x8xbf16>, vector<4x16x8xbf16>, vector<4x16x16xf32> -> vector<4x16x16xf32>
    "tpu.trace_stop"() : () -> ()
    %cst_20 = arith.constant dense<0xFF800000> : vector<4x16xf32>
    %79 = vector.multi_reduction <maximumf>, %78, %cst_20 [2] : vector<4x16x16xf32> to vector<4x16xf32>
    %80 = vector.shape_cast %79 : vector<4x16xf32> to vector<4x16x1xf32>
    %81 = vector.broadcast %80 : vector<4x16x1xf32> to vector<4x16x16xf32>
    %82 = arith.subf %78, %81 : vector<4x16x16xf32>
    %83 = math.exp %82 : vector<4x16x16xf32>
    %cst_21 = arith.constant dense<0.000000e+00> : vector<4x16xf32>
    %84 = vector.multi_reduction <add>, %83, %cst_21 [2] : vector<4x16x16xf32> to vector<4x16xf32>
    %85 = vector.shape_cast %84 : vector<4x16xf32> to vector<4x16x1xf32>
    %86 = tpu.reciprocal %85 {approx = true} : vector<4x16x1xf32> -> vector<4x16x1xf32>
    %87 = vector.broadcast %86 : vector<4x16x1xf32> to vector<4x16x16xf32>
    %88 = arith.mulf %83, %87 : vector<4x16x16xf32>
    %89 = arith.truncf %88 : vector<4x16x16xf32> to vector<4x16x16xbf16>
    %90 = arith.truncf %75 : vector<4x16x8xf32> to vector<4x16x8xbf16>
    "tpu.trace_start"() <{level = 10 : i32, message = "lnm,lmd->lnd"}> : () -> ()
    %cst_22 = arith.constant dense<0.000000e+00> : vector<4x16x8xf32>
    %91 = tpu.matmul %89, %90, %cst_22 {dimension_numbers = #tpu.dot_dimension_numbers<[2], [1], [1], [2], [0, 0, 0, 1, 1, 2], [0], [0]>} : vector<4x16x16xbf16>, vector<4x16x8xbf16>, vector<4x16x8xf32> -> vector<4x16x8xf32>
    "tpu.trace_stop"() : () -> ()
    %92 = tpu.concatenate %34, %53, %72, %91 in 2 : vector<4x16x8xf32>, vector<4x16x8xf32>, vector<4x16x8xf32>, vector<4x16x8xf32> -> vector<4x16x32xf32>
    %93 = vector.shape_cast %92 : vector<4x16x32xf32> to vector<64x32xf32>
    %c0_23 = arith.constant 0 : index
    %c0_24 = arith.constant 0 : index
    %94 = vector.load %arg8[%c0_23, %c0_24] : memref<6x32xf32, #tpu.memory_space<vmem>>, vector<6x32xf32>
    %95 = vector.extract_strided_slice %94 {offsets = [0, 0], sizes = [1, 32], strides = [1, 1]} : vector<6x32xf32> to vector<1x32xf32>
    %96 = vector.extract_strided_slice %94 {offsets = [1, 0], sizes = [1, 32], strides = [1, 1]} : vector<6x32xf32> to vector<1x32xf32>
    %97 = vector.extract_strided_slice %94 {offsets = [2, 0], sizes = [1, 32], strides = [1, 1]} : vector<6x32xf32> to vector<1x32xf32>
    %98 = vector.extract_strided_slice %94 {offsets = [3, 0], sizes = [1, 32], strides = [1, 1]} : vector<6x32xf32> to vector<1x32xf32>
    %99 = vector.extract_strided_slice %94 {offsets = [4, 0], sizes = [1, 32], strides = [1, 1]} : vector<6x32xf32> to vector<1x32xf32>
    %100 = vector.extract_strided_slice %94 {offsets = [5, 0], sizes = [1, 32], strides = [1, 1]} : vector<6x32xf32> to vector<1x32xf32>
    %c0_25 = arith.constant 0 : index
    %c0_26 = arith.constant 0 : index
    %101 = vector.load %arg4[%c0_25, %c0_26] : memref<32x32xbf16, #tpu.memory_space<vmem>>, vector<32x32xbf16>
    %102 = arith.truncf %93 : vector<64x32xf32> to vector<64x32xbf16>
    %cst_27 = arith.constant dense<0.000000e+00> : vector<64x32xf32>
    %103 = tpu.matmul %102, %101, %cst_27 {dimension_numbers = #tpu.dot_dimension_numbers<[1], [0], [0], [1], [0, 0, 1, 1], [], []>} : vector<64x32xbf16>, vector<32x32xbf16>, vector<64x32xf32> -> vector<64x32xf32>
    %104 = arith.addf %2, %103 : vector<64x32xf32>
    %105 = vector.broadcast %95 : vector<1x32xf32> to vector<64x32xf32>
    %106 = arith.addf %104, %105 : vector<64x32xf32>
    %cst_28 = arith.constant dense<0.000000e+00> : vector<64xf32>
    %107 = vector.multi_reduction <add>, %106, %cst_28 [1] : vector<64x32xf32> to vector<64xf32>
    %108 = vector.shape_cast %107 : vector<64xf32> to vector<64x1xf32>
    %cst_29 = arith.constant 3.200000e+01 : f32
    %109 = vector.broadcast %cst_29 : f32 to vector<64x1xf32>
    %110 = arith.divf %108, %109 : vector<64x1xf32>
    %111 = arith.mulf %106, %106 : vector<64x32xf32>
    %cst_30 = arith.constant dense<0.000000e+00> : vector<64xf32>
    %112 = vector.multi_reduction <add>, %111, %cst_30 [1] : vector<64x32xf32> to vector<64xf32>
    %113 = vector.shape_cast %112 : vector<64xf32> to vector<64x1xf32>
    %cst_31 = arith.constant 3.200000e+01 : f32
    %114 = vector.broadcast %cst_31 : f32 to vector<64x1xf32>
    %115 = arith.divf %113, %114 : vector<64x1xf32>
    %116 = arith.mulf %110, %110 : vector<64x1xf32>
    %117 = arith.subf %115, %116 : vector<64x1xf32>
    %118 = vector.broadcast %110 : vector<64x1xf32> to vector<64x32xf32>
    %119 = arith.subf %106, %118 : vector<64x32xf32>
    %cst_32 = arith.constant 9.99999974E-6 : f32
    %120 = vector.broadcast %cst_32 : f32 to vector<64x1xf32>
    %121 = arith.addf %117, %120 : vector<64x1xf32>
    %122 = math.rsqrt %121 : vector<64x1xf32>
    %123 = vector.broadcast %122 : vector<64x1xf32> to vector<64x32xf32>
    %124 = arith.mulf %119, %123 : vector<64x32xf32>
    %125 = vector.broadcast %96 : vector<1x32xf32> to vector<64x32xf32>
    %126 = arith.mulf %124, %125 : vector<64x32xf32>
    %127 = vector.broadcast %97 : vector<1x32xf32> to vector<64x32xf32>
    %128 = arith.addf %126, %127 : vector<64x32xf32>
    %c0_33 = arith.constant 0 : index
    %c0_34 = arith.constant 0 : index
    %129 = vector.load %arg5[%c0_33, %c0_34] : memref<32x64xbf16, #tpu.memory_space<vmem>>, vector<32x64xbf16>
    %130 = arith.truncf %128 : vector<64x32xf32> to vector<64x32xbf16>
    %cst_35 = arith.constant dense<0.000000e+00> : vector<64x64xf32>
    %131 = tpu.matmul %130, %129, %cst_35 {dimension_numbers = #tpu.dot_dimension_numbers<[1], [0], [0], [1], [0, 0, 1, 1], [], []>} : vector<64x32xbf16>, vector<32x64xbf16>, vector<64x64xf32> -> vector<64x64xf32>
    %c0_36 = arith.constant 0 : index
    %c0_37 = arith.constant 0 : index
    %132 = vector.load %arg6[%c0_36, %c0_37] : memref<1x64xf32, #tpu.memory_space<vmem>>, vector<1x64xf32>
    %133 = vector.broadcast %132 : vector<1x64xf32> to vector<64x64xf32>
    %134 = arith.addf %131, %133 : vector<64x64xf32>
    %cst_38 = arith.constant 0.000000e+00 : f32
    %135 = vector.broadcast %cst_38 : f32 to vector<64x64xf32>
    %136 = arith.maximumf %134, %135 : vector<64x64xf32>
    %c0_39 = arith.constant 0 : index
    %c0_40 = arith.constant 0 : index
    %137 = vector.load %arg7[%c0_39, %c0_40] : memref<64x32xbf16, #tpu.memory_space<vmem>>, vector<64x32xbf16>
    %138 = arith.truncf %136 : vector<64x64xf32> to vector<64x64xbf16>
    %cst_41 = arith.constant dense<0.000000e+00> : vector<64x32xf32>
    %139 = tpu.matmul %138, %137, %cst_41 {dimension_numbers = #tpu.dot_dimension_numbers<[1], [0], [0], [1], [0, 0, 1, 1], [], []>} : vector<64x64xbf16>, vector<64x32xbf16>, vector<64x32xf32> -> vector<64x32xf32>
    %140 = arith.addf %128, %139 : vector<64x32xf32>
    %141 = vector.broadcast %98 : vector<1x32xf32> to vector<64x32xf32>
    %142 = arith.addf %140, %141 : vector<64x32xf32>
    %cst_42 = arith.constant dense<0.000000e+00> : vector<64xf32>
    %143 = vector.multi_reduction <add>, %142, %cst_42 [1] : vector<64x32xf32> to vector<64xf32>
    %144 = vector.shape_cast %143 : vector<64xf32> to vector<64x1xf32>
    %cst_43 = arith.constant 3.200000e+01 : f32
    %145 = vector.broadcast %cst_43 : f32 to vector<64x1xf32>
    %146 = arith.divf %144, %145 : vector<64x1xf32>
    %147 = arith.mulf %142, %142 : vector<64x32xf32>
    %cst_44 = arith.constant dense<0.000000e+00> : vector<64xf32>
    %148 = vector.multi_reduction <add>, %147, %cst_44 [1] : vector<64x32xf32> to vector<64xf32>
    %149 = vector.shape_cast %148 : vector<64xf32> to vector<64x1xf32>
    %cst_45 = arith.constant 3.200000e+01 : f32
    %150 = vector.broadcast %cst_45 : f32 to vector<64x1xf32>
    %151 = arith.divf %149, %150 : vector<64x1xf32>
    %152 = arith.mulf %146, %146 : vector<64x1xf32>
    %153 = arith.subf %151, %152 : vector<64x1xf32>
    %154 = vector.broadcast %146 : vector<64x1xf32> to vector<64x32xf32>
    %155 = arith.subf %142, %154 : vector<64x32xf32>
    %cst_46 = arith.constant 9.99999974E-6 : f32
    %156 = vector.broadcast %cst_46 : f32 to vector<64x1xf32>
    %157 = arith.addf %153, %156 : vector<64x1xf32>
    %158 = math.rsqrt %157 : vector<64x1xf32>
    %159 = vector.broadcast %158 : vector<64x1xf32> to vector<64x32xf32>
    %160 = arith.mulf %155, %159 : vector<64x32xf32>
    %161 = vector.broadcast %99 : vector<1x32xf32> to vector<64x32xf32>
    %162 = arith.mulf %160, %161 : vector<64x32xf32>
    %163 = vector.broadcast %100 : vector<1x32xf32> to vector<64x32xf32>
    %164 = arith.addf %162, %163 : vector<64x32xf32>
    %165 = vector.shape_cast %164 : vector<64x32xf32> to vector<4x16x32xf32>
    %166 = arith.truncf %165 : vector<4x16x32xf32> to vector<4x16x32xbf16>
    %c0_47 = arith.constant 0 : index
    %c0_48 = arith.constant 0 : index
    %c0_49 = arith.constant 0 : index
    %167 = vector.load %arg9[%c0_47, %c0_48, %c0_49] : memref<4x16x32xbf16, #tpu.memory_space<vmem>>, vector<4x16x32xbf16>
    tpu.vector_store %arg9[%c0_47, %c0_48, %c0_49], %166 {strides = array<i32>} : memref<4x16x32xbf16, #tpu.memory_space<vmem>>, vector<4x16x32xbf16>,
    return
  }
  func.func @transform_0(%arg0: i32) -> (i32, i32, i32) {
    %c0_i32 = arith.constant 0 : i32
    %c0_i32_0 = arith.constant 0 : i32
    %c0_i32_1 = arith.constant 0 : i32
    return %arg0, %c0_i32, %c0_i32_0 : i32, i32, i32
  }
  func.func @transform_1(%arg0: i32) -> (i32, i32) {
    %c0_i32 = arith.constant 0 : i32
    %c0_i32_0 = arith.constant 0 : i32
    %c0_i32_1 = arith.constant 0 : i32
    return %c0_i32, %c0_i32_0 : i32, i32
  }
  func.func @transform_2(%arg0: i32) -> (i32, i32) {
    %c0_i32 = arith.constant 0 : i32
    %c0_i32_0 = arith.constant 0 : i32
    %c0_i32_1 = arith.constant 0 : i32
    return %c0_i32, %c0_i32_0 : i32, i32
  }
  func.func @transform_3(%arg0: i32) -> (i32, i32) {
    %c0_i32 = arith.constant 0 : i32
    %c0_i32_0 = arith.constant 0 : i32
    %c0_i32_1 = arith.constant 0 : i32
    return %c0_i32, %c0_i32_0 : i32, i32
  }
  func.func @transform_4(%arg0: i32) -> (i32, i32) {
    %c0_i32 = arith.constant 0 : i32
    %c0_i32_0 = arith.constant 0 : i32
    %c0_i32_1 = arith.constant 0 : i32
    return %c0_i32, %c0_i32_0 : i32, i32
  }
  func.func @transform_5(%arg0: i32) -> (i32, i32) {
    %c0_i32 = arith.constant 0 : i32
    %c0_i32_0 = arith.constant 0 : i32
    %c0_i32_1 = arith.constant 0 : i32
    return %c0_i32, %c0_i32_0 : i32, i32
  }
  func.func @transform_6(%arg0: i32) -> (i32, i32) {
    %c0_i32 = arith.constant 0 : i32
    %c0_i32_0 = arith.constant 0 : i32
    %c0_i32_1 = arith.constant 0 : i32
    return %c0_i32, %c0_i32_0 : i32, i32
  }
  func.func @transform_7(%arg0: i32) -> (i32, i32) {
    %c0_i32 = arith.constant 0 : i32
    %c0_i32_0 = arith.constant 0 : i32
    %c0_i32_1 = arith.constant 0 : i32
    return %c0_i32, %c0_i32_0 : i32, i32
  }
  func.func @transform_8(%arg0: i32) -> (i32, i32, i32) {
    %c0_i32 = arith.constant 0 : i32
    %c0_i32_0 = arith.constant 0 : i32
    %c0_i32_1 = arith.constant 0 : i32
    return %arg0, %c0_i32, %c0_i32_0 : i32, i32, i32
  }
}

</mosaic_0001>

<llo_original>
// kernel: tpu_custom_call.1
$region0: #{tpu_custom_call.1}
  #allocation0 [shape = 'u32[]', space=smem, size = 0x4, offset = 0x4, fixed_abs, tag = 'smem constant byte address 0x4 - core index']
  #allocation1 [shape = 'u32[72,128]{1,0:T(1,128)}', space=vmem, size = 0x9000, scoped, tag = 'internal scratch']
  %s0 = inlined_call_operand.hbm [shape: bf16[16,16,32], index: 0, kind: input, shape index: {}]
  %s1 = inlined_call_operand.vmem [shape: bf16[32,96], index: 1, kind: input, shape index: {}]
  %s2 = inlined_call_operand.vmem [shape: f32[1,96], index: 2, kind: input, shape index: {}]
  %s3 = inlined_call_operand.vmem [shape: bf16[32,32], index: 3, kind: input, shape index: {}]
  %s4 = inlined_call_operand.vmem [shape: bf16[32,64], index: 4, kind: input, shape index: {}]
  %s5 = inlined_call_operand.vmem [shape: f32[1,64], index: 5, kind: input, shape index: {}]
  %s6 = inlined_call_operand.vmem [shape: bf16[64,32], index: 6, kind: input, shape index: {}]
  %s7 = inlined_call_operand.hbm [shape: f32[6,32], index: 7, kind: input, shape index: {}]
  %s8 = inlined_call_operand.hbm [shape: bf16[16,16,32], index: 8, kind: output, shape index: {}]
  %s9 = sld [smem:[#allocation0]]
  $region73: #{tpu_custom_call.1} parent=0
    _
  %s11 = ssub.s32 1, %s9
  %s12 = scalar_select 0, %s11, %s9
  $region1: #{tpu_custom_call.1} parent=0
    #allocation2 [shape = 'u8[32768]{0}', space=vmem, size = 0x8000, scoped, tag = 'input window, operand 0']
    #allocation3 [shape = 's32[2]{0}', space=sflag, size = 0x8, scoped, tag = 'scoped memory for tpu_custom_call.1']
    #allocation4 [shape = 's32[2]{0}', space=sflag, size = 0x8, scoped, tag = 'scoped memory for tpu_custom_call.1']
    #allocation5 [shape = 'u8[4096]{0}', space=vmem, size = 0x1000, scoped, tag = 'input window, operand 7, single buffered']
    #allocation6 [shape = 's32[1]{0}', space=sflag, size = 0x4, scoped, tag = 'scoped memory for tpu_custom_call.1']
    #allocation7 [shape = 'u8[32768]{0}', space=vmem, size = 0x8000, scoped, tag = 'output window, operand 0']
    %13 = vsyncpa [#allocation3], 0
    %s14 = scalar_lea.sflag [#allocation3], 1
    %15 = vsyncpa %s14, 0
    %16 = vsyncpa [#allocation6], 0
    %17 = vsyncpa [#allocation4], 0
    %s18 = scalar_lea.sflag [#allocation4], 1
    %19 = vsyncpa %s18, 0
    loop: start=0, step=1, limit=6
    $region2: #{tpu_custom_call.1} parent=1 // loop_pre_header
      _
    $region3: #{tpu_custom_call.1} parent=1 // loop_header
      %s21 = sphi 0, %s25
      %p22 = scmp.ge.s32.totalorder %s21, 6
      %s31 = sphi 0, %s33
      %s34 = sphi 0, %s31
      %s35 = sphi 0, %s34
      %s51 = sphi 0, %s35
      %s55 = sphi 0, %s55
      %s57 = sphi 0, %s55
      %s58 = sphi 0, %s57
      %s72 = sphi 0, %s58
      %s76 = sphi 0, %s76
      %s78 = sphi 0, %s76
      %s79 = sphi 0, %s78
      %s93 = sphi 0, %s79
      %s97 = sphi 0, %s97
      %s99 = sphi 0, %s97
      %s100 = sphi 0, %s99
      %s114 = sphi 0, %s100
      %s118 = sphi 0, %s118
      %s120 = sphi 0, %s118
      %s121 = sphi 0, %s120
      %s135 = sphi 0, %s121
      %s139 = sphi 0, %s139
      %s141 = sphi 0, %s139
      %s142 = sphi 0, %s141
      %s156 = sphi 0, %s142
      %s160 = sphi 0, %s160
      %s162 = sphi 0, %s160
      %s163 = sphi 0, %s162
      %s177 = sphi 0, %s163
      %s181 = sphi 0, %s181
      %s183 = sphi 0, %s181
      %s184 = sphi 0, %s183
      %s198 = sphi 0, %s184
      %s204 = sphi 0, %s206
      %s207 = sphi 0, %s204
      %s208 = sphi 0, %s207
      %s224 = sphi 0, %s208
    $region4: #{tpu_custom_call.1} parent=1 // loop_header_branch
      %24 = sbr.rel (%p22) target = $region8
    $region5: #{tpu_custom_call.1} parent=1 // loop_body
      %s26 = ssub.s32 %s21, 1
      %s27 = ssub.s32 %s21, 2
      %s28 = sadd.s32 %s21, 1
      %s29 = ssub.s32 %s21, %s28
      %p30 = scmp.eq.s32.totalorder %s29, 0
      %s32 = sadd.s32 %s31, 1
      %s33 = scalar_select %p30, %s31, %s32
      %p36 = pneg %p30
      %p37 = scmp.eq.s32.totalorder %s21, 3
      %p38 = por %p36, %p37
      %p39 = scmp.ne.s32.totalorder %s31, %s34
      %p40 = scmp.eq.s32.totalorder %s21, 0
      %p41 = por %p39, %p40
      %p42 = scmp.ne.s32.totalorder %s31, %s34
      %p43 = scmp.eq.s32.totalorder %s26, 3
      %p44 = por %p42, %p43
      %p45 = scmp.ne.s32.totalorder %s34, %s35
      %p46 = scmp.eq.s32.totalorder %s26, 0
      %p47 = por %p45, %p46
      %p48 = scmp.ne.s32.totalorder %s34, %s35
      %p49 = scmp.eq.s32.totalorder %s27, 3
      %p50 = por %p48, %p49
      %p52 = scmp.ne.s32.totalorder %s35, %s51
      %p53 = scmp.eq.s32.totalorder %s27, 0
      %p54 = por %p52, %p53
      %s56 = sadd.s32 %s55, 1
      %p59 = scmp.eq.s32.totalorder %s21, 3
      %p60 = scmp.ne.s32.totalorder %s55, %s57
      %p61 = scmp.eq.s32.totalorder %s21, 0
      %p62 = por %p60, %p61
      %p63 = scmp.ne.s32.totalorder %s55, %s57
      %p64 = scmp.eq.s32.totalorder %s26, 3
      %p65 = por %p63, %p64
      %p66 = scmp.ne.s32.totalorder %s57, %s58
      %p67 = scmp.eq.s32.totalorder %s26, 0
      %p68 = por %p66, %p67
      %p69 = scmp.ne.s32.totalorder %s57, %s58
      %p70 = scmp.eq.s32.totalorder %s27, 3
      %p71 = por %p69, %p70
      %p73 = scmp.ne.s32.totalorder %s58, %s72
      %p74 = scmp.eq.s32.totalorder %s27, 0
      %p75 = por %p73, %p74
      %s77 = sadd.s32 %s76, 1
      %p80 = scmp.eq.s32.totalorder %s21, 3
      %p81 = scmp.ne.s32.totalorder %s76, %s78
      %p82 = scmp.eq.s32.totalorder %s21, 0
      %p83 = por %p81, %p82
      %p84 = scmp.ne.s32.totalorder %s76, %s78
      %p85 = scmp.eq.s32.totalorder %s26, 3
      %p86 = por %p84, %p85
      %p87 = scmp.ne.s32.totalorder %s78, %s79
      %p88 = scmp.eq.s32.totalorder %s26, 0
      %p89 = por %p87, %p88
      %p90 = scmp.ne.s32.totalorder %s78, %s79
      %p91 = scmp.eq.s32.totalorder %s27, 3
      %p92 = por %p90, %p91
      %p94 = scmp.ne.s32.totalorder %s79, %s93
      %p95 = scmp.eq.s32.totalorder %s27, 0
      %p96 = por %p94, %p95
      %s98 = sadd.s32 %s97, 1
      %p101 = scmp.eq.s32.totalorder %s21, 3
      %p102 = scmp.ne.s32.totalorder %s97, %s99
      %p103 = scmp.eq.s32.totalorder %s21, 0
      %p104 = por %p102, %p103
      %p105 = scmp.ne.s32.totalorder %s97, %s99
      %p106 = scmp.eq.s32.totalorder %s26, 3
      %p107 = por %p105, %p106
      %p108 = scmp.ne.s32.totalorder %s99, %s100
      %p109 = scmp.eq.s32.totalorder %s26, 0
      %p110 = por %p108, %p109
      %p111 = scmp.ne.s32.totalorder %s99, %s100
      %p112 = scmp.eq.s32.totalorder %s27, 3
      %p113 = por %p111, %p112
      %p115 = scmp.ne.s32.totalorder %s100, %s114
      %p116 = scmp.eq.s32.totalorder %s27, 0
      %p117 = por %p115, %p116
      %s119 = sadd.s32 %s118, 1
      %p122 = scmp.eq.s32.totalorder %s21, 3
      %p123 = scmp.ne.s32.totalorder %s118, %s120
      %p124 = scmp.eq.s32.totalorder %s21, 0
      %p125 = por %p123, %p124
      %p126 = scmp.ne.s32.totalorder %s118, %s120
      %p127 = scmp.eq.s32.totalorder %s26, 3
      %p128 = por %p126, %p127
      %p129 = scmp.ne.s32.totalorder %s120, %s121
      %p130 = scmp.eq.s32.totalorder %s26, 0
      %p131 = por %p129, %p130
      %p132 = scmp.ne.s32.totalorder %s120, %s121
      %p133 = scmp.eq.s32.totalorder %s27, 3
      %p134 = por %p132, %p133
      %p136 = scmp.ne.s32.totalorder %s121, %s135
      %p137 = scmp.eq.s32.totalorder %s27, 0
      %p138 = por %p136, %p137
      %s140 = sadd.s32 %s139, 1
      %p143 = scmp.eq.s32.totalorder %s21, 3
      %p144 = scmp.ne.s32.totalorder %s139, %s141
      %p145 = scmp.eq.s32.totalorder %s21, 0
      %p146 = por %p144, %p145
      %p147 = scmp.ne.s32.totalorder %s139, %s141
      %p148 = scmp.eq.s32.totalorder %s26, 3
      %p149 = por %p147, %p148
      %p150 = scmp.ne.s32.totalorder %s141, %s142
      %p151 = scmp.eq.s32.totalorder %s26, 0
      %p152 = por %p150, %p151
      %p153 = scmp.ne.s32.totalorder %s141, %s142
      %p154 = scmp.eq.s32.totalorder %s27, 3
      %p155 = por %p153, %p154
      %p157 = scmp.ne.s32.totalorder %s142, %s156
      %p158 = scmp.eq.s32.totalorder %s27, 0
      %p159 = por %p157, %p158
      %s161 = sadd.s32 %s160, 1
      %p164 = scmp.eq.s32.totalorder %s21, 3
      %p165 = scmp.ne.s32.totalorder %s160, %s162
      %p166 = scmp.eq.s32.totalorder %s21, 0
      %p167 = por %p165, %p166
      %p168 = scmp.ne.s32.totalorder %s160, %s162
      %p169 = scmp.eq.s32.totalorder %s26, 3
      %p170 = por %p168, %p169
      %p171 = scmp.ne.s32.totalorder %s162, %s163
      %p172 = scmp.eq.s32.totalorder %s26, 0
      %p173 = por %p171, %p172
      %p174 = scmp.ne.s32.totalorder %s162, %s163
      %p175 = scmp.eq.s32.totalorder %s27, 3
      %p176 = por %p174, %p175
      %p178 = scmp.ne.s32.totalorder %s163, %s177
      %p179 = scmp.eq.s32.totalorder %s27, 0
      %p180 = por %p178, %p179
      %s182 = sadd.s32 %s181, 1
      %p185 = scmp.eq.s32.totalorder %s21, 3
      %p186 = scmp.ne.s32.totalorder %s181, %s183
      %p187 = scmp.eq.s32.totalorder %s21, 0
      %p188 = por %p186, %p187
      %p189 = scmp.ne.s32.totalorder %s181, %s183
      %p190 = scmp.eq.s32.totalorder %s26, 3
      %p191 = por %p189, %p190
      %p192 = scmp.ne.s32.totalorder %s183, %s184
      %p193 = scmp.eq.s32.totalorder %s26, 0
      %p194 = por %p192, %p193
      %p195 = scmp.ne.s32.totalorder %s183, %s184
      %p196 = scmp.eq.s32.totalorder %s27, 3
      %p197 = por %p195, %p196
      %p199 = scmp.ne.s32.totalorder %s184, %s198
      %p200 = scmp.eq.s32.totalorder %s27, 0
      %p201 = por %p199, %p200
      %s202 = ssub.s32 %s21, %s28
      %p203 = scmp.eq.s32.totalorder %s202, 0
      %s205 = sadd.s32 %s204, 1
      %s206 = scalar_select %p203, %s204, %s205
      %p209 = pneg %p203
      %p210 = scmp.eq.s32.totalorder %s21, 3
      %p211 = por %p209, %p210
      %p212 = scmp.ne.s32.totalorder %s204, %s207
      %p213 = scmp.eq.s32.totalorder %s21, 0
      %p214 = por %p212, %p213
      %p215 = scmp.ne.s32.totalorder %s204, %s207
      %p216 = scmp.eq.s32.totalorder %s26, 3
      %p217 = por %p215, %p216
      %p218 = scmp.ne.s32.totalorder %s207, %s208
      %p219 = scmp.eq.s32.totalorder %s26, 0
      %p220 = por %p218, %p219
      %p221 = scmp.ne.s32.totalorder %s207, %s208
      %p222 = scmp.eq.s32.totalorder %s27, 3
      %p223 = por %p221, %p222
      %p225 = scmp.ne.s32.totalorder %s208, %s224
      %p226 = scmp.eq.s32.totalorder %s27, 0
      %p227 = por %p225, %p226
      %p228 = scmp.le.s32.totalorder 1, %s21
      %p229 = scmp.lt.s32.totalorder %s21, 5
      %p230 = pnand %p228, %p229
      %p231 = pneg %p230
      // Predicated region
      $region9: #{tpu_custom_call.1} parent=5 // pred_check
        _
      $region10: #{tpu_custom_call.1} parent=5 // pred_check_branch
        %233 = sbr.rel (%p230) target = $region12
      $region11: #{tpu_custom_call.1} parent=5 // pred_region
        %s234 = ssub.s32 %s21, 1
        // Predicated region
        $region13: #{tpu_custom_call.1} parent=11 // pred_check
          %p235 = pneg %p68
        $region14: #{tpu_custom_call.1} parent=11 // pred_check_branch
          %237 = sbr.rel (%p235) target = $region16
        $region15: #{tpu_custom_call.1} parent=11 // pred_region
          _
        $region16: #{tpu_custom_call.1} parent=11 // pred_fallthru
          _
        // Predicated region
        $region17: #{tpu_custom_call.1} parent=11 // pred_check
          %p238 = pneg %p89
        $region18: #{tpu_custom_call.1} parent=11 // pred_check_branch
          %240 = sbr.rel (%p238) target = $region20
        $region19: #{tpu_custom_call.1} parent=11 // pred_region
          _
        $region20: #{tpu_custom_call.1} parent=11 // pred_fallthru
          _
        // Predicated region
        $region21: #{tpu_custom_call.1} parent=11 // pred_check
          %p241 = pneg %p110
        $region22: #{tpu_custom_call.1} parent=11 // pred_check_branch
          %243 = sbr.rel (%p241) target = $region24
        $region23: #{tpu_custom_call.1} parent=11 // pred_region
          _
        $region24: #{tpu_custom_call.1} parent=11 // pred_fallthru
          _
        // Predicated region
        $region25: #{tpu_custom_call.1} parent=11 // pred_check
          %p244 = pneg %p131
        $region26: #{tpu_custom_call.1} parent=11 // pred_check_branch
          %246 = sbr.rel (%p244) target = $region28
        $region27: #{tpu_custom_call.1} parent=11 // pred_region
          _
        $region28: #{tpu_custom_call.1} parent=11 // pred_fallthru
          _
        // Predicated region
        $region29: #{tpu_custom_call.1} parent=11 // pred_check
          %p247 = pneg %p152
        $region30: #{tpu_custom_call.1} parent=11 // pred_check_branch
          %249 = sbr.rel (%p247) target = $region32
        $region31: #{tpu_custom_call.1} parent=11 // pred_region
          _
        $region32: #{tpu_custom_call.1} parent=11 // pred_fallthru
          _
        // Predicated region
        $region33: #{tpu_custom_call.1} parent=11 // pred_check
          %p250 = pneg %p173
        $region34: #{tpu_custom_call.1} parent=11 // pred_check_branch
          %252 = sbr.rel (%p250) target = $region36
        $region35: #{tpu_custom_call.1} parent=11 // pred_region
          _
        $region36: #{tpu_custom_call.1} parent=11 // pred_fallthru
          _
        // Predicated region
        $region37: #{tpu_custom_call.1} parent=11 // pred_check
          %p253 = pneg %p194
        $region38: #{tpu_custom_call.1} parent=11 // pred_check_branch
          %255 = sbr.rel (%p253) target = $region40
        $region39: #{tpu_custom_call.1} parent=11 // pred_region
          %257 = vsyncadd [#allocation6], 0
          %s259 = sshll.u32 %s7, 4
          %s260 = int_to_ptr.hbm [resolvable:$true] %s259
          %s261 = sshll.u32 [#allocation5], 4
          %s262 = int_to_ptr.vmem [resolvable:$true] %s261
          %264 = dma.hbm_to_vmem [thread:$0]  %s260, 128, %s262, [#allocation6]
        $region40: #{tpu_custom_call.1} parent=11 // pred_fallthru
          _
      $region12: #{tpu_custom_call.1} parent=5 // pred_fallthru
        _
      %p265 = scmp.lt.s32.totalorder %s21, 4
      // Predicated region
      $region41: #{tpu_custom_call.1} parent=5 // pred_check
        %p266 = pneg %p265
      $region42: #{tpu_custom_call.1} parent=5 // pred_check_branch
        %268 = sbr.rel (%p266) target = $region44
      $region43: #{tpu_custom_call.1} parent=5 // pred_region
        // Predicated region
        $region45: #{tpu_custom_call.1} parent=43 // pred_check
          %p269 = pneg %p41
        $region46: #{tpu_custom_call.1} parent=43 // pred_check_branch
          %271 = sbr.rel (%p269) target = $region48
        $region47: #{tpu_custom_call.1} parent=43 // pred_region
          %s272 = sand.u32 %s31, 1
          %s273 = scalar_lea.sflag [#allocation3], %s272
          %s274 = sand.u32 %s31, 1
          %s275 = smul.addr %s274, 32
          %s276 = scalar_lea.vmem [#allocation2], %s275
          %s277 = smul.u32 4, %s21
          %279 = vsyncadd %s273, 0
          %s280 = smul.addr %s277, 2
          %s281 = smul.addr %s280, 4
          %s282 = scalar_lea.hbm %s0, %s281
          %s283 = sshll.u32 %s282, 4
          %s284 = int_to_ptr.hbm [resolvable:$true] %s283
          %s285 = sshll.u32 %s276, 4
          %s286 = int_to_ptr.vmem [resolvable:$true] %s285
          %291 = dma.hbm_to_vmem [thread:$0]  %s284, 512, %s286, %s273, 64, 64, 4
        $region48: #{tpu_custom_call.1} parent=43 // pred_fallthru
          _
      $region44: #{tpu_custom_call.1} parent=5 // pred_fallthru
        _
      %p292 = scmp.le.s32.totalorder 1, %s21
      %p293 = scmp.lt.s32.totalorder %s21, 5
      %p294 = pnand %p292, %p293
      %p295 = pneg %p294
      // Predicated region
      $region49: #{tpu_custom_call.1} parent=5 // pred_check
        _
      $region50: #{tpu_custom_call.1} parent=5 // pred_check_branch
        %297 = sbr.rel (%p294) target = $region52
      $region51: #{tpu_custom_call.1} parent=5 // pred_region
        %s298 = ssub.s32 %s21, 1
        %s299 = sand.u32 %s34, 1
        %s300 = scalar_lea.sflag [#allocation3], %s299
        %s301 = sand.u32 %s34, 1
        %s302 = smul.addr %s301, 32
        %s303 = scalar_lea.vmem [#allocation2], %s302
        // Predicated region
        $region53: #{tpu_custom_call.1} parent=51 // pred_check
          %p304 = pneg %p47
        $region54: #{tpu_custom_call.1} parent=51 // pred_check_branch
          %306 = sbr.rel (%p304) target = $region56
        $region55: #{tpu_custom_call.1} parent=51 // pred_region
          %308 = dma.done %s300, 512
        $region56: #{tpu_custom_call.1} parent=51 // pred_fallthru
          _
        // Predicated region
        $region57: #{tpu_custom_call.1} parent=51 // pred_check
          %p309 = pneg %p194
        $region58: #{tpu_custom_call.1} parent=51 // pred_check_branch
          %311 = sbr.rel (%p309) target = $region60
        $region59: #{tpu_custom_call.1} parent=51 // pred_region
          %313 = dma.done [#allocation6], 128
        $region60: #{tpu_custom_call.1} parent=51 // pred_fallthru
          _
        %s314 = sand.u32 %s34, 1
        %s315 = scalar_lea.sflag [#allocation3], %s314
        %s316 = sand.u32 %s34, 1
        %s317 = smul.addr %s316, 32
        %s318 = scalar_lea.vmem [#allocation2], %s317
        %p319 = pneg %p47
        %p320 = pneg %p44
        %p321 = pneg %p68
        %p322 = pneg %p65
        %p323 = pneg %p89
        %p324 = pneg %p86
        %p325 = pneg %p110
        %p326 = pneg %p107
        %p327 = pneg %p131
        %p328 = pneg %p128
        %p329 = pneg %p152
        %p330 = pneg %p149
        %p331 = pneg %p173
        %p332 = pneg %p170
        %p333 = pneg %p194
        %p334 = pneg %p191
        %p335 = pneg %p220
        %p336 = pneg %p217
        %s337 = sand.u32 %s207, 1
        %s338 = scalar_lea.sflag [#allocation4], %s337
        %s339 = sand.u32 %s207, 1
        %s340 = smul.addr %s339, 32
        %s341 = scalar_lea.vmem [#allocation7], %s340
        %s342 = smul.u32 4, %s26
        %s343 = smul.u32 4, %s26
        %v345 = vld [vmem:[%s303] sm:$0xf]
        %v346 = vld [vmem:[%s303 + $0x4] sm:$0xf]
        %v347 = vld [vmem:[%s303 + $0x8] sm:$0xf]
        %v348 = vld [vmem:[%s303 + $0xc] sm:$0xf]
        %v349 = vld [vmem:[%s303 + $0x10] sm:$0xf]
        %v350 = vld [vmem:[%s303 + $0x14] sm:$0xf]
        %v351 = vld [vmem:[%s303 + $0x18] sm:$0xf]
        %v352 = vld [vmem:[%s303 + $0x1c] sm:$0xf]
        %v353 = vunpack.c.l.bf16 %v345
        %v354 = vunpack.c.l.bf16 %v346
        %v355 = vunpack.c.l.bf16 %v347
        %v356 = vunpack.c.l.bf16 %v348
        %v357 = vunpack.c.l.bf16 %v349
        %v358 = vunpack.c.l.bf16 %v350
        %v359 = vunpack.c.l.bf16 %v351
        %v360 = vunpack.c.l.bf16 %v352
        %v361 = vld [vmem:[%s1] sm:$0xf]
        %v362 = vld [vmem:[%s1 + $0x4] sm:$0xf]
        %v363 = vld [vmem:[%s1 + $0x8] sm:$0xf]
        %v364 = vld [vmem:[%s1 + $0xc] sm:$0xf]
        %v365 = vld [vmem:[%s2] sm:$0x1]
        %v367 = vperm.slane %v365, 0
        %v377 = vunpack.c.l.b16 %v345
        %v378 = vunpack.c.l.b16 %v346
        %v379 = vunpack.c.l.b16 %v347
        %v380 = vunpack.c.l.b16 %v348
        %v381 = vunpack.c.l.b16 %v349
        %v382 = vunpack.c.l.b16 %v350
        %v383 = vunpack.c.l.b16 %v351
        %v384 = vunpack.c.l.b16 %v352
        %v385 = vpack.c.b16 %v378, %v377
        %v386 = vpack.c.b16 %v380, %v379
        %v387 = vpack.c.b16 %v382, %v381
        %v388 = vpack.c.b16 %v384, %v383
        %v393 = vunpack.c.l.b16 %v361
        %v394 = vunpack.c.l.b16 %v362
        %v395 = vunpack.c.l.b16 %v363
        %v396 = vunpack.c.l.b16 %v364
        %v397 = vpack.c.b16 %v394, %v393
        %v398 = vpack.c.b16 %v396, %v395
        %vm401 = vcmask 261120
        %v403 = vsel %vm401, %v385, 0
        %v406 = vsel %vm401, %v386, 0
        %v409 = vsel %vm401, %v387, 0
        %v412 = vsel %vm401, %v388, 0
        %414 = vmatpush.bf16.msra.mxu0 0
        %415 = vmatpush.bf16.msra.mxu0 0
        %416 = vmatpush.bf16.msra.mxu0 0
        %417 = vmatpush.bf16.msra.mxu0 0
        %418 = vmatpush.bf16.msra.mxu0 0
        %419 = vmatpush.bf16.msra.mxu0 0
        %420 = vmatpush.bf16.msra.mxu0 %v398
        %421 = vmatpush.bf16.msra.mxu0 %v397
        %422 = vmatmul.bf16.gmra.mxu0 %v403
        %v423 = vpop.f32.mrf.mxu0
        %v424 = vadd.f32 %v367, %v423
        %v425 = vpop.f32.mrf.mxu0
        %v426 = vadd.f32 %v367, %v425
        %427 = vmatmul.bf16.gmra.mxu0 %v406
        %v428 = vpop.f32.mrf.mxu0
        %v429 = vadd.f32 %v367, %v428
        %v430 = vpop.f32.mrf.mxu0
        %v431 = vadd.f32 %v367, %v430
        %432 = vmatmul.bf16.gmra.mxu0 %v409
        %v433 = vpop.f32.mrf.mxu0
        %v434 = vadd.f32 %v367, %v433
        %v435 = vpop.f32.mrf.mxu0
        %v436 = vadd.f32 %v367, %v435
        %437 = vmatmul.bf16.gmra.mxu0 %v412
        %v438 = vpop.f32.mrf.mxu0
        %v439 = vadd.f32 %v367, %v438
        %v440 = vpop.f32.mrf.mxu0
        %v441 = vadd.f32 %v367, %v440
        %442 = vdwg.mxu0
        %v443 = vmul.f32 %v424, 0.35355338
        %v444 = vmul.f32 %v426, 0.35355338
        %v445 = vmul.f32 %v429, 0.35355338
        %v446 = vmul.f32 %v431, 0.35355338
        %v447 = vmul.f32 %v434, 0.35355338
        %v448 = vmul.f32 %v436, 0.35355338
        %v449 = vmul.f32 %v439, 0.35355338
        %v450 = vmul.f32 %v441, 0.35355338
        %v451 = vpack.c.bf16 %v443, %v443
        %v452 = vpack.c.bf16 %v444, %v444
        %v453 = vpack.c.bf16 %v445, %v445
        %v454 = vpack.c.bf16 %v446, %v446
        %v455 = vpack.c.bf16 %v447, %v447
        %v456 = vpack.c.bf16 %v448, %v448
        %v457 = vpack.c.bf16 %v449, %v449
        %v458 = vpack.c.bf16 %v450, %v450
        %v459 = vpack.c.bf16 %v424, %v424
        %v460 = vpack.c.bf16 %v426, %v426
        %v461 = vpack.c.bf16 %v429, %v429
        %v462 = vpack.c.bf16 %v431, %v431
        %v463 = vpack.c.bf16 %v434, %v434
        %v464 = vpack.c.bf16 %v436, %v436
        %v465 = vpack.c.bf16 %v439, %v439
        %v466 = vpack.c.bf16 %v441, %v441
        %v469 = vunpack.c.l.b16 %v451
        %v470 = vunpack.c.l.b16 %v452
        %v471 = vpack.c.b16 %v470, %v469
        %v474 = vunpack.c.l.b16 %v459
        %v475 = vunpack.c.l.b16 %v460
        %v476 = vpack.c.b16 %v475, %v474
        %477 = vrot.lane.b32.xlu0 %v476, 96
        %v478 = vpop.permute.xlu0 %477
        %vm479 = vcmask 64512
        %v481 = vsel %vm479, %v471, 0
        %v484 = vsel %vm479, %v478, 0
        %486 = vmatpush.bf16.xpose.msra.mxu0 0
        %487 = vmatpush.bf16.xpose.msra.mxu0 0
        %488 = vmatpush.bf16.xpose.msra.mxu0 0
        %489 = vmatpush.bf16.xpose.msra.mxu0 0
        %490 = vmatpush.bf16.xpose.msra.mxu0 0
        %491 = vmatpush.bf16.xpose.msra.mxu0 0
        %492 = vmatpush.bf16.xpose.msra.mxu0 0
        %493 = vmatpush.bf16.xpose.msra.mxu0 %v484
        %494 = vmatmul.bf16.gmra.mxu0 %v481
        %v495 = vpop.f32.mrf.mxu0
        %v496 = vadd.f32 0.0, %v495
        %v497 = vpop.f32.mrf.mxu0
        %v498 = vadd.f32 0.0, %v497
        %499 = vdwg.mxu0
        %v502 = vunpack.c.l.b16 %v453
        %v503 = vunpack.c.l.b16 %v454
        %v504 = vpack.c.b16 %v503, %v502
        %v507 = vunpack.c.l.b16 %v461
        %v508 = vunpack.c.l.b16 %v462
        %v509 = vpack.c.b16 %v508, %v507
        %510 = vrot.lane.b32.xlu0 %v509, 96
        %v511 = vpop.permute.xlu0 %510
        %v513 = vsel %vm479, %v504, 0
        %v516 = vsel %vm479, %v511, 0
        %518 = vmatpush.bf16.xpose.msra.mxu0 0
        %519 = vmatpush.bf16.xpose.msra.mxu0 0
        %520 = vmatpush.bf16.xpose.msra.mxu0 0
        %521 = vmatpush.bf16.xpose.msra.mxu0 0
        %522 = vmatpush.bf16.xpose.msra.mxu0 0
        %523 = vmatpush.bf16.xpose.msra.mxu0 0
        %524 = vmatpush.bf16.xpose.msra.mxu0 0
        %525 = vmatpush.bf16.xpose.msra.mxu0 %v516
        %526 = vmatmul.bf16.gmra.mxu0 %v513
        %v527 = vpop.f32.mrf.mxu0
        %v528 = vadd.f32 0.0, %v527
        %v529 = vpop.f32.mrf.mxu0
        %v530 = vadd.f32 0.0, %v529
        %531 = vdwg.mxu0
        %v534 = vunpack.c.l.b16 %v455
        %v535 = vunpack.c.l.b16 %v456
        %v536 = vpack.c.b16 %v535, %v534
        %v539 = vunpack.c.l.b16 %v463
        %v540 = vunpack.c.l.b16 %v464
        %v541 = vpack.c.b16 %v540, %v539
        %542 = vrot.lane.b32.xlu0 %v541, 96
        %v543 = vpop.permute.xlu0 %542
        %v545 = vsel %vm479, %v536, 0
        %v548 = vsel %vm479, %v543, 0
        %550 = vmatpush.bf16.xpose.msra.mxu0 0
        %551 = vmatpush.bf16.xpose.msra.mxu0 0
        %552 = vmatpush.bf16.xpose.msra.mxu0 0
        %553 = vmatpush.bf16.xpose.msra.mxu0 0
        %554 = vmatpush.bf16.xpose.msra.mxu0 0
        %555 = vmatpush.bf16.xpose.msra.mxu0 0
        %556 = vmatpush.bf16.xpose.msra.mxu0 0
        %557 = vmatpush.bf16.xpose.msra.mxu0 %v548
        %558 = vmatmul.bf16.gmra.mxu0 %v545
        %v559 = vpop.f32.mrf.mxu0
        %v560 = vadd.f32 0.0, %v559
        %v561 = vpop.f32.mrf.mxu0
        %v562 = vadd.f32 0.0, %v561
        %563 = vdwg.mxu0
        %v566 = vunpack.c.l.b16 %v457
        %v567 = vunpack.c.l.b16 %v458
        %v568 = vpack.c.b16 %v567, %v566
        %v571 = vunpack.c.l.b16 %v465
        %v572 = vunpack.c.l.b16 %v466
        %v573 = vpack.c.b16 %v572, %v571
        %574 = vrot.lane.b32.xlu0 %v573, 96
        %v575 = vpop.permute.xlu0 %574
        %v577 = vsel %vm479, %v568, 0
        %v580 = vsel %vm479, %v575, 0
        %582 = vmatpush.bf16.xpose.msra.mxu0 0
        %583 = vmatpush.bf16.xpose.msra.mxu0 0
        %584 = vmatpush.bf16.xpose.msra.mxu0 0
        %585 = vmatpush.bf16.xpose.msra.mxu0 0
        %586 = vmatpush.bf16.xpose.msra.mxu0 0
        %587 = vmatpush.bf16.xpose.msra.mxu0 0
        %588 = vmatpush.bf16.xpose.msra.mxu0 0
        %589 = vmatpush.bf16.xpose.msra.mxu0 %v580
        %590 = vmatmul.bf16.gmra.mxu0 %v577
        %v591 = vpop.f32.mrf.mxu0
        %v592 = vadd.f32 0.0, %v591
        %v593 = vpop.f32.mrf.mxu0
        %v594 = vadd.f32 0.0, %v593
        %595 = vdwg.mxu0
        %vm596 = vcmask 130048
        %v597 = vsel %vm596, %v496, -inf
        %598 = vmax.xlane.f32.xlu0 %v597
        %v599 = vpop.xlane.xlu0 %598
        %v600 = vsel %vm596, %v498, -inf
        %601 = vmax.xlane.f32.xlu0 %v600
        %v602 = vpop.xlane.xlu0 %601
        %v603 = vsel %vm596, %v528, -inf
        %604 = vmax.xlane.f32.xlu0 %v603
        %v605 = vpop.xlane.xlu0 %604
        %v606 = vsel %vm596, %v530, -inf
        %607 = vmax.xlane.f32.xlu0 %v606
        %v608 = vpop.xlane.xlu0 %607
        %v609 = vsel %vm596, %v560, -inf
        %610 = vmax.xlane.f32.xlu0 %v609
        %v611 = vpop.xlane.xlu0 %610
        %v612 = vsel %vm596, %v562, -inf
        %613 = vmax.xlane.f32.xlu0 %v612
        %v614 = vpop.xlane.xlu0 %613
        %v615 = vsel %vm596, %v592, -inf
        %616 = vmax.xlane.f32.xlu0 %v615
        %v617 = vpop.xlane.xlu0 %616
        %v618 = vsel %vm596, %v594, -inf
        %619 = vmax.xlane.f32.xlu0 %v618
        %v620 = vpop.xlane.xlu0 %619
        %v621 = vsub.f32 %v496, %v599
        %v622 = vsub.f32 %v498, %v602
        %v623 = vsub.f32 %v528, %v605
        %v624 = vsub.f32 %v530, %v608
        %v625 = vsub.f32 %v560, %v611
        %v626 = vsub.f32 %v562, %v614
        %v627 = vsub.f32 %v592, %v617
        %v628 = vsub.f32 %v594, %v620
        %v629 = vmul.f32 %v621, 1.442695
        %v630 = vpow.pop %v629
        %v631 = vmul.f32 %v622, 1.442695
        %v632 = vpow.pop %v631
        %v633 = vmul.f32 %v623, 1.442695
        %v634 = vpow.pop %v633
        %v635 = vmul.f32 %v624, 1.442695
        %v636 = vpow.pop %v635
        %v637 = vmul.f32 %v625, 1.442695
        %v638 = vpow.pop %v637
        %v639 = vmul.f32 %v626, 1.442695
        %v640 = vpow.pop %v639
        %v641 = vmul.f32 %v627, 1.442695
        %v642 = vpow.pop %v641
        %v643 = vmul.f32 %v628, 1.442695
        %v644 = vpow.pop %v643
        %v645 = vsel %vm596, %v630, 0.0
        %646 = vadd.xlane.f32.xlu0 %v645
        %v647 = vpop.xlane.xlu0 %646
        %v648 = vsel %vm596, %v632, 0.0
        %649 = vadd.xlane.f32.xlu0 %v648
        %v650 = vpop.xlane.xlu0 %649
        %v651 = vsel %vm596, %v634, 0.0
        %652 = vadd.xlane.f32.xlu0 %v651
        %v653 = vpop.xlane.xlu0 %652
        %v654 = vsel %vm596, %v636, 0.0
        %655 = vadd.xlane.f32.xlu0 %v654
        %v656 = vpop.xlane.xlu0 %655
        %v657 = vsel %vm596, %v638, 0.0
        %658 = vadd.xlane.f32.xlu0 %v657
        %v659 = vpop.xlane.xlu0 %658
        %v660 = vsel %vm596, %v640, 0.0
        %661 = vadd.xlane.f32.xlu0 %v660
        %v662 = vpop.xlane.xlu0 %661
        %v663 = vsel %vm596, %v642, 0.0
        %664 = vadd.xlane.f32.xlu0 %v663
        %v665 = vpop.xlane.xlu0 %664
        %v666 = vsel %vm596, %v644, 0.0
        %667 = vadd.xlane.f32.xlu0 %v666
        %v668 = vpop.xlane.xlu0 %667
        %v669 = vrcp.pop %v647
        %v670 = vrcp.pop %v650
        %v671 = vrcp.pop %v653
        %v672 = vrcp.pop %v656
        %v673 = vrcp.pop %v659
        %v674 = vrcp.pop %v662
        %v675 = vrcp.pop %v665
        %v676 = vrcp.pop %v668
        %v677 = vmul.f32 %v630, %v669
        %v678 = vmul.f32 %v632, %v670
        %v679 = vmul.f32 %v634, %v671
        %v680 = vmul.f32 %v636, %v672
        %v681 = vmul.f32 %v638, %v673
        %v682 = vmul.f32 %v640, %v674
        %v683 = vmul.f32 %v642, %v675
        %v684 = vmul.f32 %v644, %v676
        %v685 = vpack.c.bf16 %v677, %v677
        %v686 = vpack.c.bf16 %v678, %v678
        %v687 = vpack.c.bf16 %v679, %v679
        %v688 = vpack.c.bf16 %v680, %v680
        %v689 = vpack.c.bf16 %v681, %v681
        %v690 = vpack.c.bf16 %v682, %v682
        %v691 = vpack.c.bf16 %v683, %v683
        %v692 = vpack.c.bf16 %v684, %v684
        %v695 = vunpack.c.l.b16 %v685
        %v696 = vunpack.c.l.b16 %v686
        %v697 = vpack.c.b16 %v696, %v695
        %698 = vrot.lane.b32.xlu0 %v476, 64
        %v699 = vpop.permute.xlu0 %698
        %v702 = vsel %vm596, %v697, 0
        %704 = vmatpush.bf16.msra.mxu0 0
        %705 = vmatpush.bf16.msra.mxu0 0
        %706 = vmatpush.bf16.msra.mxu0 0
        %707 = vmatpush.bf16.msra.mxu0 0
        %708 = vmatpush.bf16.msra.mxu0 0
        %709 = vmatpush.bf16.msra.mxu0 0
        %710 = vmatpush.bf16.msra.mxu0 0
        %711 = vmatpush.bf16.msra.mxu0 %v699
        %712 = vmatmul.bf16.gmra.mxu0 %v702
        %v713 = vpop.f32.mrf.mxu0
        %v714 = vadd.f32 0.0, %v713
        %v715 = vpop.f32.mrf.mxu0
        %v716 = vadd.f32 0.0, %v715
        %717 = vdwg.mxu0
        %v720 = vunpack.c.l.b16 %v687
        %v721 = vunpack.c.l.b16 %v688
        %v722 = vpack.c.b16 %v721, %v720
        %723 = vrot.lane.b32.xlu0 %v509, 64
        %v724 = vpop.permute.xlu0 %723
        %v727 = vsel %vm596, %v722, 0
        %729 = vmatpush.bf16.msra.mxu0 0
        %730 = vmatpush.bf16.msra.mxu0 0
        %731 = vmatpush.bf16.msra.mxu0 0
        %732 = vmatpush.bf16.msra.mxu0 0
        %733 = vmatpush.bf16.msra.mxu0 0
        %734 = vmatpush.bf16.msra.mxu0 0
        %735 = vmatpush.bf16.msra.mxu0 0
        %736 = vmatpush.bf16.msra.mxu0 %v724
        %737 = vmatmul.bf16.gmra.mxu0 %v727
        %v738 = vpop.f32.mrf.mxu0
        %v739 = vadd.f32 0.0, %v738
        %v740 = vpop.f32.mrf.mxu0
        %v741 = vadd.f32 0.0, %v740
        %742 = vdwg.mxu0
        %v745 = vunpack.c.l.b16 %v689
        %v746 = vunpack.c.l.b16 %v690
        %v747 = vpack.c.b16 %v746, %v745
        %748 = vrot.lane.b32.xlu0 %v541, 64
        %v749 = vpop.permute.xlu0 %748
        %v752 = vsel %vm596, %v747, 0
        %754 = vmatpush.bf16.msra.mxu0 0
        %755 = vmatpush.bf16.msra.mxu0 0
        %756 = vmatpush.bf16.msra.mxu0 0
        %757 = vmatpush.bf16.msra.mxu0 0
        %758 = vmatpush.bf16.msra.mxu0 0
        %759 = vmatpush.bf16.msra.mxu0 0
        %760 = vmatpush.bf16.msra.mxu0 0
        %761 = vmatpush.bf16.msra.mxu0 %v749
        %762 = vmatmul.bf16.gmra.mxu0 %v752
        %v763 = vpop.f32.mrf.mxu0
        %v764 = vadd.f32 0.0, %v763
        %v765 = vpop.f32.mrf.mxu0
        %v766 = vadd.f32 0.0, %v765
        %767 = vdwg.mxu0
        %v770 = vunpack.c.l.b16 %v691
        %v771 = vunpack.c.l.b16 %v692
        %v772 = vpack.c.b16 %v771, %v770
        %773 = vrot.lane.b32.xlu0 %v573, 64
        %v774 = vpop.permute.xlu0 %773
        %v777 = vsel %vm596, %v772, 0
        %779 = vmatpush.bf16.msra.mxu0 0
        %780 = vmatpush.bf16.msra.mxu0 0
        %781 = vmatpush.bf16.msra.mxu0 0
        %782 = vmatpush.bf16.msra.mxu0 0
        %783 = vmatpush.bf16.msra.mxu0 0
        %784 = vmatpush.bf16.msra.mxu0 0
        %785 = vmatpush.bf16.msra.mxu0 0
        %786 = vmatpush.bf16.msra.mxu0 %v774
        %787 = vmatmul.bf16.gmra.mxu0 %v777
        %v788 = vpop.f32.mrf.mxu0
        %v789 = vadd.f32 0.0, %v788
        %v790 = vpop.f32.mrf.mxu0
        %v791 = vadd.f32 0.0, %v790
        %792 = vdwg.mxu0
        %793 = vrot.lane.b32.xlu0 %v471, 120
        %v794 = vpop.permute.xlu0 %793
        %795 = vrot.lane.b32.xlu0 %v476, 88
        %v796 = vpop.permute.xlu0 %795
        %v798 = vsel %vm479, %v794, 0
        %v801 = vsel %vm479, %v796, 0
        %803 = vmatpush.bf16.xpose.msra.mxu0 0
        %804 = vmatpush.bf16.xpose.msra.mxu0 0
        %805 = vmatpush.bf16.xpose.msra.mxu0 0
        %806 = vmatpush.bf16.xpose.msra.mxu0 0
        %807 = vmatpush.bf16.xpose.msra.mxu0 0
        %808 = vmatpush.bf16.xpose.msra.mxu0 0
        %809 = vmatpush.bf16.xpose.msra.mxu0 0
        %810 = vmatpush.bf16.xpose.msra.mxu0 %v801
        %811 = vmatmul.bf16.gmra.mxu0 %v798
        %v812 = vpop.f32.mrf.mxu0
        %v813 = vadd.f32 0.0, %v812
        %v814 = vpop.f32.mrf.mxu0
        %v815 = vadd.f32 0.0, %v814
        %816 = vdwg.mxu0
        %817 = vrot.lane.b32.xlu0 %v504, 120
        %v818 = vpop.permute.xlu0 %817
        %819 = vrot.lane.b32.xlu0 %v509, 88
        %v820 = vpop.permute.xlu0 %819
        %v822 = vsel %vm479, %v818, 0
        %v825 = vsel %vm479, %v820, 0
        %827 = vmatpush.bf16.xpose.msra.mxu0 0
        %828 = vmatpush.bf16.xpose.msra.mxu0 0
        %829 = vmatpush.bf16.xpose.msra.mxu0 0
        %830 = vmatpush.bf16.xpose.msra.mxu0 0
        %831 = vmatpush.bf16.xpose.msra.mxu0 0
        %832 = vmatpush.bf16.xpose.msra.mxu0 0
        %833 = vmatpush.bf16.xpose.msra.mxu0 0
        %834 = vmatpush.bf16.xpose.msra.mxu0 %v825
        %835 = vmatmul.bf16.gmra.mxu0 %v822
        %v836 = vpop.f32.mrf.mxu0
        %v837 = vadd.f32 0.0, %v836
        %v838 = vpop.f32.mrf.mxu0
        %v839 = vadd.f32 0.0, %v838
        %840 = vdwg.mxu0
        %841 = vrot.lane.b32.xlu0 %v536, 120
        %v842 = vpop.permute.xlu0 %841
        %843 = vrot.lane.b32.xlu0 %v541, 88
        %v844 = vpop.permute.xlu0 %843
        %v846 = vsel %vm479, %v842, 0
        %v849 = vsel %vm479, %v844, 0
        %851 = vmatpush.bf16.xpose.msra.mxu0 0
        %852 = vmatpush.bf16.xpose.msra.mxu0 0
        %853 = vmatpush.bf16.xpose.msra.mxu0 0
        %854 = vmatpush.bf16.xpose.msra.mxu0 0
        %855 = vmatpush.bf16.xpose.msra.mxu0 0
        %856 = vmatpush.bf16.xpose.msra.mxu0 0
        %857 = vmatpush.bf16.xpose.msra.mxu0 0
        %858 = vmatpush.bf16.xpose.msra.mxu0 %v849
        %859 = vmatmul.bf16.gmra.mxu0 %v846
        %v860 = vpop.f32.mrf.mxu0
        %v861 = vadd.f32 0.0, %v860
        %v862 = vpop.f32.mrf.mxu0
        %v863 = vadd.f32 0.0, %v862
        %864 = vdwg.mxu0
        %865 = vrot.lane.b32.xlu0 %v568, 120
        %v866 = vpop.permute.xlu0 %865
        %867 = vrot.lane.b32.xlu0 %v573, 88
        %v868 = vpop.permute.xlu0 %867
        %v870 = vsel %vm479, %v866, 0
        %v873 = vsel %vm479, %v868, 0
        %875 = vmatpush.bf16.xpose.msra.mxu0 0
        %876 = vmatpush.bf16.xpose.msra.mxu0 0
        %877 = vmatpush.bf16.xpose.msra.mxu0 0
        %878 = vmatpush.bf16.xpose.msra.mxu0 0
        %879 = vmatpush.bf16.xpose.msra.mxu0 0
        %880 = vmatpush.bf16.xpose.msra.mxu0 0
        %881 = vmatpush.bf16.xpose.msra.mxu0 0
        %882 = vmatpush.bf16.xpose.msra.mxu0 %v873
        %883 = vmatmul.bf16.gmra.mxu0 %v870
        %v884 = vpop.f32.mrf.mxu0
        %v885 = vadd.f32 0.0, %v884
        %v886 = vpop.f32.mrf.mxu0
        %v887 = vadd.f32 0.0, %v886
        %888 = vdwg.mxu0
        %v889 = vsel %vm596, %v813, -inf
        %890 = vmax.xlane.f32.xlu0 %v889
        %v891 = vpop.xlane.xlu0 %890
        %v892 = vsel %vm596, %v815, -inf
        %893 = vmax.xlane.f32.xlu0 %v892
        %v894 = vpop.xlane.xlu0 %893
        %v895 = vsel %vm596, %v837, -inf
        %896 = vmax.xlane.f32.xlu0 %v895
        %v897 = vpop.xlane.xlu0 %896
        %v898 = vsel %vm596, %v839, -inf
        %899 = vmax.xlane.f32.xlu0 %v898
        %v900 = vpop.xlane.xlu0 %899
        %v901 = vsel %vm596, %v861, -inf
        %902 = vmax.xlane.f32.xlu0 %v901
        %v903 = vpop.xlane.xlu0 %902
        %v904 = vsel %vm596, %v863, -inf
        %905 = vmax.xlane.f32.xlu0 %v904
        %v906 = vpop.xlane.xlu0 %905
        %v907 = vsel %vm596, %v885, -inf
        %908 = vmax.xlane.f32.xlu0 %v907
        %v909 = vpop.xlane.xlu0 %908
        %v910 = vsel %vm596, %v887, -inf
        %911 = vmax.xlane.f32.xlu0 %v910
        %v912 = vpop.xlane.xlu0 %911
        %v913 = vsub.f32 %v813, %v891
        %v914 = vsub.f32 %v815, %v894
        %v915 = vsub.f32 %v837, %v897
        %v916 = vsub.f32 %v839, %v900
        %v917 = vsub.f32 %v861, %v903
        %v918 = vsub.f32 %v863, %v906
        %v919 = vsub.f32 %v885, %v909
        %v920 = vsub.f32 %v887, %v912
        %v921 = vmul.f32 %v913, 1.442695
        %v922 = vpow.pop %v921
        %v923 = vmul.f32 %v914, 1.442695
        %v924 = vpow.pop %v923
        %v925 = vmul.f32 %v915, 1.442695
        %v926 = vpow.pop %v925
        %v927 = vmul.f32 %v916, 1.442695
        %v928 = vpow.pop %v927
        %v929 = vmul.f32 %v917, 1.442695
        %v930 = vpow.pop %v929
        %v931 = vmul.f32 %v918, 1.442695
        %v932 = vpow.pop %v931
        %v933 = vmul.f32 %v919, 1.442695
        %v934 = vpow.pop %v933
        %v935 = vmul.f32 %v920, 1.442695
        %v936 = vpow.pop %v935
        %v937 = vsel %vm596, %v922, 0.0
        %938 = vadd.xlane.f32.xlu0 %v937
        %v939 = vpop.xlane.xlu0 %938
        %v940 = vsel %vm596, %v924, 0.0
        %941 = vadd.xlane.f32.xlu0 %v940
        %v942 = vpop.xlane.xlu0 %941
        %v943 = vsel %vm596, %v926, 0.0
        %944 = vadd.xlane.f32.xlu0 %v943
        %v945 = vpop.xlane.xlu0 %944
        %v946 = vsel %vm596, %v928, 0.0
        %947 = vadd.xlane.f32.xlu0 %v946
        %v948 = vpop.xlane.xlu0 %947
        %v949 = vsel %vm596, %v930, 0.0
        %950 = vadd.xlane.f32.xlu0 %v949
        %v951 = vpop.xlane.xlu0 %950
        %v952 = vsel %vm596, %v932, 0.0
        %953 = vadd.xlane.f32.xlu0 %v952
        %v954 = vpop.xlane.xlu0 %953
        %v955 = vsel %vm596, %v934, 0.0
        %956 = vadd.xlane.f32.xlu0 %v955
        %v957 = vpop.xlane.xlu0 %956
        %v958 = vsel %vm596, %v936, 0.0
        %959 = vadd.xlane.f32.xlu0 %v958
        %v960 = vpop.xlane.xlu0 %959
        %v961 = vrcp.pop %v939
        %v962 = vrcp.pop %v942
        %v963 = vrcp.pop %v945
        %v964 = vrcp.pop %v948
        %v965 = vrcp.pop %v951
        %v966 = vrcp.pop %v954
        %v967 = vrcp.pop %v957
        %v968 = vrcp.pop %v960
        %v969 = vmul.f32 %v922, %v961
        %v970 = vmul.f32 %v924, %v962
        %v971 = vmul.f32 %v926, %v963
        %v972 = vmul.f32 %v928, %v964
        %v973 = vmul.f32 %v930, %v965
        %v974 = vmul.f32 %v932, %v966
        %v975 = vmul.f32 %v934, %v967
        %v976 = vmul.f32 %v936, %v968
        %v977 = vpack.c.bf16 %v969, %v969
        %v978 = vpack.c.bf16 %v970, %v970
        %v979 = vpack.c.bf16 %v971, %v971
        %v980 = vpack.c.bf16 %v972, %v972
        %v981 = vpack.c.bf16 %v973, %v973
        %v982 = vpack.c.bf16 %v974, %v974
        %v983 = vpack.c.bf16 %v975, %v975
        %v984 = vpack.c.bf16 %v976, %v976
        %v987 = vunpack.c.l.b16 %v977
        %v988 = vunpack.c.l.b16 %v978
        %v989 = vpack.c.b16 %v988, %v987
        %990 = vrot.lane.b32.xlu0 %v476, 56
        %v991 = vpop.permute.xlu0 %990
        %v994 = vsel %vm596, %v989, 0
        %996 = vmatpush.bf16.msra.mxu0 0
        %997 = vmatpush.bf16.msra.mxu0 0
        %998 = vmatpush.bf16.msra.mxu0 0
        %999 = vmatpush.bf16.msra.mxu0 0
        %1000 = vmatpush.bf16.msra.mxu0 0
        %1001 = vmatpush.bf16.msra.mxu0 0
        %1002 = vmatpush.bf16.msra.mxu0 0
        %1003 = vmatpush.bf16.msra.mxu0 %v991
        %1004 = vmatmul.bf16.gmra.mxu0 %v994
        %v1005 = vpop.f32.mrf.mxu0
        %v1006 = vadd.f32 0.0, %v1005
        %v1007 = vpop.f32.mrf.mxu0
        %v1008 = vadd.f32 0.0, %v1007
        %1009 = vdwg.mxu0
        %v1012 = vunpack.c.l.b16 %v979
        %v1013 = vunpack.c.l.b16 %v980
        %v1014 = vpack.c.b16 %v1013, %v1012
        %1015 = vrot.lane.b32.xlu0 %v509, 56
        %v1016 = vpop.permute.xlu0 %1015
        %v1019 = vsel %vm596, %v1014, 0
        %1021 = vmatpush.bf16.msra.mxu0 0
        %1022 = vmatpush.bf16.msra.mxu0 0
        %1023 = vmatpush.bf16.msra.mxu0 0
        %1024 = vmatpush.bf16.msra.mxu0 0
        %1025 = vmatpush.bf16.msra.mxu0 0
        %1026 = vmatpush.bf16.msra.mxu0 0
        %1027 = vmatpush.bf16.msra.mxu0 0
        %1028 = vmatpush.bf16.msra.mxu0 %v1016
        %1029 = vmatmul.bf16.gmra.mxu0 %v1019
        %v1030 = vpop.f32.mrf.mxu0
        %v1031 = vadd.f32 0.0, %v1030
        %v1032 = vpop.f32.mrf.mxu0
        %v1033 = vadd.f32 0.0, %v1032
        %1034 = vdwg.mxu0
        %v1037 = vunpack.c.l.b16 %v981
        %v1038 = vunpack.c.l.b16 %v982
        %v1039 = vpack.c.b16 %v1038, %v1037
        %1040 = vrot.lane.b32.xlu0 %v541, 56
        %v1041 = vpop.permute.xlu0 %1040
        %v1044 = vsel %vm596, %v1039, 0
        %1046 = vmatpush.bf16.msra.mxu0 0
        %1047 = vmatpush.bf16.msra.mxu0 0
        %1048 = vmatpush.bf16.msra.mxu0 0
        %1049 = vmatpush.bf16.msra.mxu0 0
        %1050 = vmatpush.bf16.msra.mxu0 0
        %1051 = vmatpush.bf16.msra.mxu0 0
        %1052 = vmatpush.bf16.msra.mxu0 0
        %1053 = vmatpush.bf16.msra.mxu0 %v1041
        %1054 = vmatmul.bf16.gmra.mxu0 %v1044
        %v1055 = vpop.f32.mrf.mxu0
        %v1056 = vadd.f32 0.0, %v1055
        %v1057 = vpop.f32.mrf.mxu0
        %v1058 = vadd.f32 0.0, %v1057
        %1059 = vdwg.mxu0
        %v1062 = vunpack.c.l.b16 %v983
        %v1063 = vunpack.c.l.b16 %v984
        %v1064 = vpack.c.b16 %v1063, %v1062
        %1065 = vrot.lane.b32.xlu0 %v573, 56
        %v1066 = vpop.permute.xlu0 %1065
        %v1069 = vsel %vm596, %v1064, 0
        %1071 = vmatpush.bf16.msra.mxu0 0
        %1072 = vmatpush.bf16.msra.mxu0 0
        %1073 = vmatpush.bf16.msra.mxu0 0
        %1074 = vmatpush.bf16.msra.mxu0 0
        %1075 = vmatpush.bf16.msra.mxu0 0
        %1076 = vmatpush.bf16.msra.mxu0 0
        %1077 = vmatpush.bf16.msra.mxu0 0
        %1078 = vmatpush.bf16.msra.mxu0 %v1066
        %1079 = vmatmul.bf16.gmra.mxu0 %v1069
        %v1080 = vpop.f32.mrf.mxu0
        %v1081 = vadd.f32 0.0, %v1080
        %v1082 = vpop.f32.mrf.mxu0
        %v1083 = vadd.f32 0.0, %v1082
        %1084 = vdwg.mxu0
        %1085 = vrot.lane.b32.xlu0 %v471, 112
        %v1086 = vpop.permute.xlu0 %1085
        %1087 = vrot.lane.b32.xlu0 %v476, 80
        %v1088 = vpop.permute.xlu0 %1087
        %v1090 = vsel %vm479, %v1086, 0
        %v1093 = vsel %vm479, %v1088, 0
        %1095 = vmatpush.bf16.xpose.msra.mxu0 0
        %1096 = vmatpush.bf16.xpose.msra.mxu0 0
        %1097 = vmatpush.bf16.xpose.msra.mxu0 0
        %1098 = vmatpush.bf16.xpose.msra.mxu0 0
        %1099 = vmatpush.bf16.xpose.msra.mxu0 0
        %1100 = vmatpush.bf16.xpose.msra.mxu0 0
        %1101 = vmatpush.bf16.xpose.msra.mxu0 0
        %1102 = vmatpush.bf16.xpose.msra.mxu0 %v1093
        %1103 = vmatmul.bf16.gmra.mxu0 %v1090
        %v1104 = vpop.f32.mrf.mxu0
        %v1105 = vadd.f32 0.0, %v1104
        %v1106 = vpop.f32.mrf.mxu0
        %v1107 = vadd.f32 0.0, %v1106
        %1108 = vdwg.mxu0
        %1109 = vrot.lane.b32.xlu0 %v504, 112
        %v1110 = vpop.permute.xlu0 %1109
        %1111 = vrot.lane.b32.xlu0 %v509, 80
        %v1112 = vpop.permute.xlu0 %1111
        %v1114 = vsel %vm479, %v1110, 0
        %v1117 = vsel %vm479, %v1112, 0
        %1119 = vmatpush.bf16.xpose.msra.mxu0 0
        %1120 = vmatpush.bf16.xpose.msra.mxu0 0
        %1121 = vmatpush.bf16.xpose.msra.mxu0 0
        %1122 = vmatpush.bf16.xpose.msra.mxu0 0
        %1123 = vmatpush.bf16.xpose.msra.mxu0 0
        %1124 = vmatpush.bf16.xpose.msra.mxu0 0
        %1125 = vmatpush.bf16.xpose.msra.mxu0 0
        %1126 = vmatpush.bf16.xpose.msra.mxu0 %v1117
        %1127 = vmatmul.bf16.gmra.mxu0 %v1114
        %v1128 = vpop.f32.mrf.mxu0
        %v1129 = vadd.f32 0.0, %v1128
        %v1130 = vpop.f32.mrf.mxu0
        %v1131 = vadd.f32 0.0, %v1130
        %1132 = vdwg.mxu0
        %1133 = vrot.lane.b32.xlu0 %v536, 112
        %v1134 = vpop.permute.xlu0 %1133
        %1135 = vrot.lane.b32.xlu0 %v541, 80
        %v1136 = vpop.permute.xlu0 %1135
        %v1138 = vsel %vm479, %v1134, 0
        %v1141 = vsel %vm479, %v1136, 0
        %1143 = vmatpush.bf16.xpose.msra.mxu0 0
        %1144 = vmatpush.bf16.xpose.msra.mxu0 0
        %1145 = vmatpush.bf16.xpose.msra.mxu0 0
        %1146 = vmatpush.bf16.xpose.msra.mxu0 0
        %1147 = vmatpush.bf16.xpose.msra.mxu0 0
        %1148 = vmatpush.bf16.xpose.msra.mxu0 0
        %1149 = vmatpush.bf16.xpose.msra.mxu0 0
        %1150 = vmatpush.bf16.xpose.msra.mxu0 %v1141
        %1151 = vmatmul.bf16.gmra.mxu0 %v1138
        %v1152 = vpop.f32.mrf.mxu0
        %v1153 = vadd.f32 0.0, %v1152
        %v1154 = vpop.f32.mrf.mxu0
        %v1155 = vadd.f32 0.0, %v1154
        %1156 = vdwg.mxu0
        %1157 = vrot.lane.b32.xlu0 %v568, 112
        %v1158 = vpop.permute.xlu0 %1157
        %1159 = vrot.lane.b32.xlu0 %v573, 80
        %v1160 = vpop.permute.xlu0 %1159
        %v1162 = vsel %vm479, %v1158, 0
        %v1165 = vsel %vm479, %v1160, 0
        %1167 = vmatpush.bf16.xpose.msra.mxu0 0
        %1168 = vmatpush.bf16.xpose.msra.mxu0 0
        %1169 = vmatpush.bf16.xpose.msra.mxu0 0
        %1170 = vmatpush.bf16.xpose.msra.mxu0 0
        %1171 = vmatpush.bf16.xpose.msra.mxu0 0
        %1172 = vmatpush.bf16.xpose.msra.mxu0 0
        %1173 = vmatpush.bf16.xpose.msra.mxu0 0
        %1174 = vmatpush.bf16.xpose.msra.mxu0 %v1165
        %1175 = vmatmul.bf16.gmra.mxu0 %v1162
        %v1176 = vpop.f32.mrf.mxu0
        %v1177 = vadd.f32 0.0, %v1176
        %v1178 = vpop.f32.mrf.mxu0
        %v1179 = vadd.f32 0.0, %v1178
        %1180 = vdwg.mxu0
        %v1181 = vsel %vm596, %v1105, -inf
        %1182 = vmax.xlane.f32.xlu0 %v1181
        %v1183 = vpop.xlane.xlu0 %1182
        %v1184 = vsel %vm596, %v1107, -inf
        %1185 = vmax.xlane.f32.xlu0 %v1184
        %v1186 = vpop.xlane.xlu0 %1185
        %v1187 = vsel %vm596, %v1129, -inf
        %1188 = vmax.xlane.f32.xlu0 %v1187
        %v1189 = vpop.xlane.xlu0 %1188
        %v1190 = vsel %vm596, %v1131, -inf
        %1191 = vmax.xlane.f32.xlu0 %v1190
        %v1192 = vpop.xlane.xlu0 %1191
        %v1193 = vsel %vm596, %v1153, -inf
        %1194 = vmax.xlane.f32.xlu0 %v1193
        %v1195 = vpop.xlane.xlu0 %1194
        %v1196 = vsel %vm596, %v1155, -inf
        %1197 = vmax.xlane.f32.xlu0 %v1196
        %v1198 = vpop.xlane.xlu0 %1197
        %v1199 = vsel %vm596, %v1177, -inf
        %1200 = vmax.xlane.f32.xlu0 %v1199
        %v1201 = vpop.xlane.xlu0 %1200
        %v1202 = vsel %vm596, %v1179, -inf
        %1203 = vmax.xlane.f32.xlu0 %v1202
        %v1204 = vpop.xlane.xlu0 %1203
        %v1205 = vsub.f32 %v1105, %v1183
        %v1206 = vsub.f32 %v1107, %v1186
        %v1207 = vsub.f32 %v1129, %v1189
        %v1208 = vsub.f32 %v1131, %v1192
        %v1209 = vsub.f32 %v1153, %v1195
        %v1210 = vsub.f32 %v1155, %v1198
        %v1211 = vsub.f32 %v1177, %v1201
        %v1212 = vsub.f32 %v1179, %v1204
        %v1213 = vmul.f32 %v1205, 1.442695
        %v1214 = vpow.pop %v1213
        %v1215 = vmul.f32 %v1206, 1.442695
        %v1216 = vpow.pop %v1215
        %v1217 = vmul.f32 %v1207, 1.442695
        %v1218 = vpow.pop %v1217
        %v1219 = vmul.f32 %v1208, 1.442695
        %v1220 = vpow.pop %v1219
        %v1221 = vmul.f32 %v1209, 1.442695
        %v1222 = vpow.pop %v1221
        %v1223 = vmul.f32 %v1210, 1.442695
        %v1224 = vpow.pop %v1223
        %v1225 = vmul.f32 %v1211, 1.442695
        %v1226 = vpow.pop %v1225
        %v1227 = vmul.f32 %v1212, 1.442695
        %v1228 = vpow.pop %v1227
        %v1229 = vsel %vm596, %v1214, 0.0
        %1230 = vadd.xlane.f32.xlu0 %v1229
        %v1231 = vpop.xlane.xlu0 %1230
        %v1232 = vsel %vm596, %v1216, 0.0
        %1233 = vadd.xlane.f32.xlu0 %v1232
        %v1234 = vpop.xlane.xlu0 %1233
        %v1235 = vsel %vm596, %v1218, 0.0
        %1236 = vadd.xlane.f32.xlu0 %v1235
        %v1237 = vpop.xlane.xlu0 %1236
        %v1238 = vsel %vm596, %v1220, 0.0
        %1239 = vadd.xlane.f32.xlu0 %v1238
        %v1240 = vpop.xlane.xlu0 %1239
        %v1241 = vsel %vm596, %v1222, 0.0
        %1242 = vadd.xlane.f32.xlu0 %v1241
        %v1243 = vpop.xlane.xlu0 %1242
        %v1244 = vsel %vm596, %v1224, 0.0
        %1245 = vadd.xlane.f32.xlu0 %v1244
        %v1246 = vpop.xlane.xlu0 %1245
        %v1247 = vsel %vm596, %v1226, 0.0
        %1248 = vadd.xlane.f32.xlu0 %v1247
        %v1249 = vpop.xlane.xlu0 %1248
        %v1250 = vsel %vm596, %v1228, 0.0
        %1251 = vadd.xlane.f32.xlu0 %v1250
        %v1252 = vpop.xlane.xlu0 %1251
        %v1253 = vrcp.pop %v1231
        %v1254 = vrcp.pop %v1234
        %v1255 = vrcp.pop %v1237
        %v1256 = vrcp.pop %v1240
        %v1257 = vrcp.pop %v1243
        %v1258 = vrcp.pop %v1246
        %v1259 = vrcp.pop %v1249
        %v1260 = vrcp.pop %v1252
        %v1261 = vmul.f32 %v1214, %v1253
        %v1262 = vmul.f32 %v1216, %v1254
        %v1263 = vmul.f32 %v1218, %v1255
        %v1264 = vmul.f32 %v1220, %v1256
        %v1265 = vmul.f32 %v1222, %v1257
        %v1266 = vmul.f32 %v1224, %v1258
        %v1267 = vmul.f32 %v1226, %v1259
        %v1268 = vmul.f32 %v1228, %v1260
        %v1269 = vpack.c.bf16 %v1261, %v1261
        %v1270 = vpack.c.bf16 %v1262, %v1262
        %v1271 = vpack.c.bf16 %v1263, %v1263
        %v1272 = vpack.c.bf16 %v1264, %v1264
        %v1273 = vpack.c.bf16 %v1265, %v1265
        %v1274 = vpack.c.bf16 %v1266, %v1266
        %v1275 = vpack.c.bf16 %v1267, %v1267
        %v1276 = vpack.c.bf16 %v1268, %v1268
        %v1279 = vunpack.c.l.b16 %v1269
        %v1280 = vunpack.c.l.b16 %v1270
        %v1281 = vpack.c.b16 %v1280, %v1279
        %1282 = vrot.lane.b32.xlu0 %v476, 48
        %v1283 = vpop.permute.xlu0 %1282
        %v1286 = vsel %vm596, %v1281, 0
        %1288 = vmatpush.bf16.msra.mxu0 0
        %1289 = vmatpush.bf16.msra.mxu0 0
        %1290 = vmatpush.bf16.msra.mxu0 0
        %1291 = vmatpush.bf16.msra.mxu0 0
        %1292 = vmatpush.bf16.msra.mxu0 0
        %1293 = vmatpush.bf16.msra.mxu0 0
        %1294 = vmatpush.bf16.msra.mxu0 0
        %1295 = vmatpush.bf16.msra.mxu0 %v1283
        %1296 = vmatmul.bf16.gmra.mxu0 %v1286
        %v1297 = vpop.f32.mrf.mxu0
        %v1298 = vadd.f32 0.0, %v1297
        %v1299 = vpop.f32.mrf.mxu0
        %v1300 = vadd.f32 0.0, %v1299
        %1301 = vdwg.mxu0
        %v1304 = vunpack.c.l.b16 %v1271
        %v1305 = vunpack.c.l.b16 %v1272
        %v1306 = vpack.c.b16 %v1305, %v1304
        %1307 = vrot.lane.b32.xlu0 %v509, 48
        %v1308 = vpop.permute.xlu0 %1307
        %v1311 = vsel %vm596, %v1306, 0
        %1313 = vmatpush.bf16.msra.mxu0 0
        %1314 = vmatpush.bf16.msra.mxu0 0
        %1315 = vmatpush.bf16.msra.mxu0 0
        %1316 = vmatpush.bf16.msra.mxu0 0
        %1317 = vmatpush.bf16.msra.mxu0 0
        %1318 = vmatpush.bf16.msra.mxu0 0
        %1319 = vmatpush.bf16.msra.mxu0 0
        %1320 = vmatpush.bf16.msra.mxu0 %v1308
        %1321 = vmatmul.bf16.gmra.mxu0 %v1311
        %v1322 = vpop.f32.mrf.mxu0
        %v1323 = vadd.f32 0.0, %v1322
        %v1324 = vpop.f32.mrf.mxu0
        %v1325 = vadd.f32 0.0, %v1324
        %1326 = vdwg.mxu0
        %v1329 = vunpack.c.l.b16 %v1273
        %v1330 = vunpack.c.l.b16 %v1274
        %v1331 = vpack.c.b16 %v1330, %v1329
        %1332 = vrot.lane.b32.xlu0 %v541, 48
        %v1333 = vpop.permute.xlu0 %1332
        %v1336 = vsel %vm596, %v1331, 0
        %1338 = vmatpush.bf16.msra.mxu0 0
        %1339 = vmatpush.bf16.msra.mxu0 0
        %1340 = vmatpush.bf16.msra.mxu0 0
        %1341 = vmatpush.bf16.msra.mxu0 0
        %1342 = vmatpush.bf16.msra.mxu0 0
        %1343 = vmatpush.bf16.msra.mxu0 0
        %1344 = vmatpush.bf16.msra.mxu0 0
        %1345 = vmatpush.bf16.msra.mxu0 %v1333
        %1346 = vmatmul.bf16.gmra.mxu0 %v1336
        %v1347 = vpop.f32.mrf.mxu0
        %v1348 = vadd.f32 0.0, %v1347
        %v1349 = vpop.f32.mrf.mxu0
        %v1350 = vadd.f32 0.0, %v1349
        %1351 = vdwg.mxu0
        %v1354 = vunpack.c.l.b16 %v1275
        %v1355 = vunpack.c.l.b16 %v1276
        %v1356 = vpack.c.b16 %v1355, %v1354
        %1357 = vrot.lane.b32.xlu0 %v573, 48
        %v1358 = vpop.permute.xlu0 %1357
        %v1361 = vsel %vm596, %v1356, 0
        %1363 = vmatpush.bf16.msra.mxu0 0
        %1364 = vmatpush.bf16.msra.mxu0 0
        %1365 = vmatpush.bf16.msra.mxu0 0
        %1366 = vmatpush.bf16.msra.mxu0 0
        %1367 = vmatpush.bf16.msra.mxu0 0
        %1368 = vmatpush.bf16.msra.mxu0 0
        %1369 = vmatpush.bf16.msra.mxu0 0
        %1370 = vmatpush.bf16.msra.mxu0 %v1358
        %1371 = vmatmul.bf16.gmra.mxu0 %v1361
        %v1372 = vpop.f32.mrf.mxu0
        %v1373 = vadd.f32 0.0, %v1372
        %v1374 = vpop.f32.mrf.mxu0
        %v1375 = vadd.f32 0.0, %v1374
        %1376 = vdwg.mxu0
        %1377 = vrot.lane.b32.xlu0 %v471, 104
        %v1378 = vpop.permute.xlu0 %1377
        %1379 = vrot.lane.b32.xlu0 %v476, 72
        %v1380 = vpop.permute.xlu0 %1379
        %v1382 = vsel %vm479, %v1378, 0
        %v1385 = vsel %vm479, %v1380, 0
        %1387 = vmatpush.bf16.xpose.msra.mxu0 0
        %1388 = vmatpush.bf16.xpose.msra.mxu0 0
        %1389 = vmatpush.bf16.xpose.msra.mxu0 0
        %1390 = vmatpush.bf16.xpose.msra.mxu0 0
        %1391 = vmatpush.bf16.xpose.msra.mxu0 0
        %1392 = vmatpush.bf16.xpose.msra.mxu0 0
        %1393 = vmatpush.bf16.xpose.msra.mxu0 0
        %1394 = vmatpush.bf16.xpose.msra.mxu0 %v1385
        %1395 = vmatmul.bf16.gmra.mxu0 %v1382
        %v1396 = vpop.f32.mrf.mxu0
        %v1397 = vadd.f32 0.0, %v1396
        %v1398 = vpop.f32.mrf.mxu0
        %v1399 = vadd.f32 0.0, %v1398
        %1400 = vdwg.mxu0
        %1401 = vrot.lane.b32.xlu0 %v504, 104
        %v1402 = vpop.permute.xlu0 %1401
        %1403 = vrot.lane.b32.xlu0 %v509, 72
        %v1404 = vpop.permute.xlu0 %1403
        %v1406 = vsel %vm479, %v1402, 0
        %v1409 = vsel %vm479, %v1404, 0
        %1411 = vmatpush.bf16.xpose.msra.mxu0 0
        %1412 = vmatpush.bf16.xpose.msra.mxu0 0
        %1413 = vmatpush.bf16.xpose.msra.mxu0 0
        %1414 = vmatpush.bf16.xpose.msra.mxu0 0
        %1415 = vmatpush.bf16.xpose.msra.mxu0 0
        %1416 = vmatpush.bf16.xpose.msra.mxu0 0
        %1417 = vmatpush.bf16.xpose.msra.mxu0 0
        %1418 = vmatpush.bf16.xpose.msra.mxu0 %v1409
        %1419 = vmatmul.bf16.gmra.mxu0 %v1406
        %v1420 = vpop.f32.mrf.mxu0
        %v1421 = vadd.f32 0.0, %v1420
        %v1422 = vpop.f32.mrf.mxu0
        %v1423 = vadd.f32 0.0, %v1422
        %1424 = vdwg.mxu0
        %1425 = vrot.lane.b32.xlu0 %v536, 104
        %v1426 = vpop.permute.xlu0 %1425
        %1427 = vrot.lane.b32.xlu0 %v541, 72
        %v1428 = vpop.permute.xlu0 %1427
        %v1430 = vsel %vm479, %v1426, 0
        %v1433 = vsel %vm479, %v1428, 0
        %1435 = vmatpush.bf16.xpose.msra.mxu0 0
        %1436 = vmatpush.bf16.xpose.msra.mxu0 0
        %1437 = vmatpush.bf16.xpose.msra.mxu0 0
        %1438 = vmatpush.bf16.xpose.msra.mxu0 0
        %1439 = vmatpush.bf16.xpose.msra.mxu0 0
        %1440 = vmatpush.bf16.xpose.msra.mxu0 0
        %1441 = vmatpush.bf16.xpose.msra.mxu0 0
        %1442 = vmatpush.bf16.xpose.msra.mxu0 %v1433
        %1443 = vmatmul.bf16.gmra.mxu0 %v1430
        %v1444 = vpop.f32.mrf.mxu0
        %v1445 = vadd.f32 0.0, %v1444
        %v1446 = vpop.f32.mrf.mxu0
        %v1447 = vadd.f32 0.0, %v1446
        %1448 = vdwg.mxu0
        %1449 = vrot.lane.b32.xlu0 %v568, 104
        %v1450 = vpop.permute.xlu0 %1449
        %1451 = vrot.lane.b32.xlu0 %v573, 72
        %v1452 = vpop.permute.xlu0 %1451
        %v1454 = vsel %vm479, %v1450, 0
        %v1457 = vsel %vm479, %v1452, 0
        %1459 = vmatpush.bf16.xpose.msra.mxu0 0
        %1460 = vmatpush.bf16.xpose.msra.mxu0 0
        %1461 = vmatpush.bf16.xpose.msra.mxu0 0
        %1462 = vmatpush.bf16.xpose.msra.mxu0 0
        %1463 = vmatpush.bf16.xpose.msra.mxu0 0
        %1464 = vmatpush.bf16.xpose.msra.mxu0 0
        %1465 = vmatpush.bf16.xpose.msra.mxu0 0
        %1466 = vmatpush.bf16.xpose.msra.mxu0 %v1457
        %1467 = vmatmul.bf16.gmra.mxu0 %v1454
        %v1468 = vpop.f32.mrf.mxu0
        %v1469 = vadd.f32 0.0, %v1468
        %v1470 = vpop.f32.mrf.mxu0
        %v1471 = vadd.f32 0.0, %v1470
        %1472 = vdwg.mxu0
        %v1473 = vsel %vm596, %v1397, -inf
        %1474 = vmax.xlane.f32.xlu0 %v1473
        %v1475 = vpop.xlane.xlu0 %1474
        %v1476 = vsel %vm596, %v1399, -inf
        %1477 = vmax.xlane.f32.xlu0 %v1476
        %v1478 = vpop.xlane.xlu0 %1477
        %v1479 = vsel %vm596, %v1421, -inf
        %1480 = vmax.xlane.f32.xlu0 %v1479
        %v1481 = vpop.xlane.xlu0 %1480
        %v1482 = vsel %vm596, %v1423, -inf
        %1483 = vmax.xlane.f32.xlu0 %v1482
        %v1484 = vpop.xlane.xlu0 %1483
        %v1485 = vsel %vm596, %v1445, -inf
        %1486 = vmax.xlane.f32.xlu0 %v1485
        %v1487 = vpop.xlane.xlu0 %1486
        %v1488 = vsel %vm596, %v1447, -inf
        %1489 = vmax.xlane.f32.xlu0 %v1488
        %v1490 = vpop.xlane.xlu0 %1489
        %v1491 = vsel %vm596, %v1469, -inf
        %1492 = vmax.xlane.f32.xlu0 %v1491
        %v1493 = vpop.xlane.xlu0 %1492
        %v1494 = vsel %vm596, %v1471, -inf
        %1495 = vmax.xlane.f32.xlu0 %v1494
        %v1496 = vpop.xlane.xlu0 %1495
        %v1497 = vsub.f32 %v1397, %v1475
        %v1498 = vsub.f32 %v1399, %v1478
        %v1499 = vsub.f32 %v1421, %v1481
        %v1500 = vsub.f32 %v1423, %v1484
        %v1501 = vsub.f32 %v1445, %v1487
        %v1502 = vsub.f32 %v1447, %v1490
        %v1503 = vsub.f32 %v1469, %v1493
        %v1504 = vsub.f32 %v1471, %v1496
        %v1505 = vmul.f32 %v1497, 1.442695
        %v1506 = vpow.pop %v1505
        %v1507 = vmul.f32 %v1498, 1.442695
        %v1508 = vpow.pop %v1507
        %v1509 = vmul.f32 %v1499, 1.442695
        %v1510 = vpow.pop %v1509
        %v1511 = vmul.f32 %v1500, 1.442695
        %v1512 = vpow.pop %v1511
        %v1513 = vmul.f32 %v1501, 1.442695
        %v1514 = vpow.pop %v1513
        %v1515 = vmul.f32 %v1502, 1.442695
        %v1516 = vpow.pop %v1515
        %v1517 = vmul.f32 %v1503, 1.442695
        %v1518 = vpow.pop %v1517
        %v1519 = vmul.f32 %v1504, 1.442695
        %v1520 = vpow.pop %v1519
        %v1521 = vsel %vm596, %v1506, 0.0
        %1522 = vadd.xlane.f32.xlu0 %v1521
        %v1523 = vpop.xlane.xlu0 %1522
        %v1524 = vsel %vm596, %v1508, 0.0
        %1525 = vadd.xlane.f32.xlu0 %v1524
        %v1526 = vpop.xlane.xlu0 %1525
        %v1527 = vsel %vm596, %v1510, 0.0
        %1528 = vadd.xlane.f32.xlu0 %v1527
        %v1529 = vpop.xlane.xlu0 %1528
        %v1530 = vsel %vm596, %v1512, 0.0
        %1531 = vadd.xlane.f32.xlu0 %v1530
        %v1532 = vpop.xlane.xlu0 %1531
        %v1533 = vsel %vm596, %v1514, 0.0
        %1534 = vadd.xlane.f32.xlu0 %v1533
        %v1535 = vpop.xlane.xlu0 %1534
        %v1536 = vsel %vm596, %v1516, 0.0
        %1537 = vadd.xlane.f32.xlu0 %v1536
        %v1538 = vpop.xlane.xlu0 %1537
        %v1539 = vsel %vm596, %v1518, 0.0
        %1540 = vadd.xlane.f32.xlu0 %v1539
        %v1541 = vpop.xlane.xlu0 %1540
        %v1542 = vsel %vm596, %v1520, 0.0
        %1543 = vadd.xlane.f32.xlu0 %v1542
        %v1544 = vpop.xlane.xlu0 %1543
        %v1545 = vrcp.pop %v1523
        %v1546 = vrcp.pop %v1526
        %v1547 = vrcp.pop %v1529
        %v1548 = vrcp.pop %v1532
        %v1549 = vrcp.pop %v1535
        %v1550 = vrcp.pop %v1538
        %v1551 = vrcp.pop %v1541
        %v1552 = vrcp.pop %v1544
        %v1553 = vmul.f32 %v1506, %v1545
        %v1554 = vmul.f32 %v1508, %v1546
        %v1555 = vmul.f32 %v1510, %v1547
        %v1556 = vmul.f32 %v1512, %v1548
        %v1557 = vmul.f32 %v1514, %v1549
        %v1558 = vmul.f32 %v1516, %v1550
        %v1559 = vmul.f32 %v1518, %v1551
        %v1560 = vmul.f32 %v1520, %v1552
        %v1561 = vpack.c.bf16 %v1553, %v1553
        %v1562 = vpack.c.bf16 %v1554, %v1554
        %v1563 = vpack.c.bf16 %v1555, %v1555
        %v1564 = vpack.c.bf16 %v1556, %v1556
        %v1565 = vpack.c.bf16 %v1557, %v1557
        %v1566 = vpack.c.bf16 %v1558, %v1558
        %v1567 = vpack.c.bf16 %v1559, %v1559
        %v1568 = vpack.c.bf16 %v1560, %v1560
        %v1571 = vunpack.c.l.b16 %v1561
        %v1572 = vunpack.c.l.b16 %v1562
        %v1573 = vpack.c.b16 %v1572, %v1571
        %1574 = vrot.lane.b32.xlu0 %v476, 40
        %v1575 = vpop.permute.xlu0 %1574
        %v1578 = vsel %vm596, %v1573, 0
        %1580 = vmatpush.bf16.msra.mxu0 0
        %1581 = vmatpush.bf16.msra.mxu0 0
        %1582 = vmatpush.bf16.msra.mxu0 0
        %1583 = vmatpush.bf16.msra.mxu0 0
        %1584 = vmatpush.bf16.msra.mxu0 0
        %1585 = vmatpush.bf16.msra.mxu0 0
        %1586 = vmatpush.bf16.msra.mxu0 0
        %1587 = vmatpush.bf16.msra.mxu0 %v1575
        %1588 = vmatmul.bf16.gmra.mxu0 %v1578
        %v1589 = vpop.f32.mrf.mxu0
        %v1590 = vadd.f32 0.0, %v1589
        %v1591 = vpop.f32.mrf.mxu0
        %v1592 = vadd.f32 0.0, %v1591
        %1593 = vdwg.mxu0
        %v1596 = vunpack.c.l.b16 %v1563
        %v1597 = vunpack.c.l.b16 %v1564
        %v1598 = vpack.c.b16 %v1597, %v1596
        %1599 = vrot.lane.b32.xlu0 %v509, 40
        %v1600 = vpop.permute.xlu0 %1599
        %v1603 = vsel %vm596, %v1598, 0
        %1605 = vmatpush.bf16.msra.mxu0 0
        %1606 = vmatpush.bf16.msra.mxu0 0
        %1607 = vmatpush.bf16.msra.mxu0 0
        %1608 = vmatpush.bf16.msra.mxu0 0
        %1609 = vmatpush.bf16.msra.mxu0 0
        %1610 = vmatpush.bf16.msra.mxu0 0
        %1611 = vmatpush.bf16.msra.mxu0 0
        %1612 = vmatpush.bf16.msra.mxu0 %v1600
        %1613 = vmatmul.bf16.gmra.mxu0 %v1603
        %v1614 = vpop.f32.mrf.mxu0
        %v1615 = vadd.f32 0.0, %v1614
        %v1616 = vpop.f32.mrf.mxu0
        %v1617 = vadd.f32 0.0, %v1616
        %1618 = vdwg.mxu0
        %v1621 = vunpack.c.l.b16 %v1565
        %v1622 = vunpack.c.l.b16 %v1566
        %v1623 = vpack.c.b16 %v1622, %v1621
        %1624 = vrot.lane.b32.xlu0 %v541, 40
        %v1625 = vpop.permute.xlu0 %1624
        %v1628 = vsel %vm596, %v1623, 0
        %1630 = vmatpush.bf16.msra.mxu0 0
        %1631 = vmatpush.bf16.msra.mxu0 0
        %1632 = vmatpush.bf16.msra.mxu0 0
        %1633 = vmatpush.bf16.msra.mxu0 0
        %1634 = vmatpush.bf16.msra.mxu0 0
        %1635 = vmatpush.bf16.msra.mxu0 0
        %1636 = vmatpush.bf16.msra.mxu0 0
        %1637 = vmatpush.bf16.msra.mxu0 %v1625
        %1638 = vmatmul.bf16.gmra.mxu0 %v1628
        %v1639 = vpop.f32.mrf.mxu0
        %v1640 = vadd.f32 0.0, %v1639
        %v1641 = vpop.f32.mrf.mxu0
        %v1642 = vadd.f32 0.0, %v1641
        %1643 = vdwg.mxu0
        %v1646 = vunpack.c.l.b16 %v1567
        %v1647 = vunpack.c.l.b16 %v1568
        %v1648 = vpack.c.b16 %v1647, %v1646
        %1649 = vrot.lane.b32.xlu0 %v573, 40
        %v1650 = vpop.permute.xlu0 %1649
        %v1653 = vsel %vm596, %v1648, 0
        %1655 = vmatpush.bf16.msra.mxu0 0
        %1656 = vmatpush.bf16.msra.mxu0 0
        %1657 = vmatpush.bf16.msra.mxu0 0
        %1658 = vmatpush.bf16.msra.mxu0 0
        %1659 = vmatpush.bf16.msra.mxu0 0
        %1660 = vmatpush.bf16.msra.mxu0 0
        %1661 = vmatpush.bf16.msra.mxu0 0
        %1662 = vmatpush.bf16.msra.mxu0 %v1650
        %1663 = vmatmul.bf16.gmra.mxu0 %v1653
        %v1664 = vpop.f32.mrf.mxu0
        %v1665 = vadd.f32 0.0, %v1664
        %v1666 = vpop.f32.mrf.mxu0
        %v1667 = vadd.f32 0.0, %v1666
        %1668 = vdwg.mxu0
        %1677 = vrot.lane.b32.xlu0 %v1006, 8
        %v1678 = vpop.permute.xlu0 %1677
        %1679 = vrot.lane.b32.xlu0 %v1008, 8
        %v1680 = vpop.permute.xlu0 %1679
        %1681 = vrot.lane.b32.xlu0 %v1031, 8
        %v1682 = vpop.permute.xlu0 %1681
        %1683 = vrot.lane.b32.xlu0 %v1033, 8
        %v1684 = vpop.permute.xlu0 %1683
        %1685 = vrot.lane.b32.xlu0 %v1056, 8
        %v1686 = vpop.permute.xlu0 %1685
        %1687 = vrot.lane.b32.xlu0 %v1058, 8
        %v1688 = vpop.permute.xlu0 %1687
        %1689 = vrot.lane.b32.xlu0 %v1081, 8
        %v1690 = vpop.permute.xlu0 %1689
        %1691 = vrot.lane.b32.xlu0 %v1083, 8
        %v1692 = vpop.permute.xlu0 %1691
        %1709 = vrot.lane.b32.xlu0 %v1298, 16
        %v1710 = vpop.permute.xlu0 %1709
        %1711 = vrot.lane.b32.xlu0 %v1300, 16
        %v1712 = vpop.permute.xlu0 %1711
        %1713 = vrot.lane.b32.xlu0 %v1323, 16
        %v1714 = vpop.permute.xlu0 %1713
        %1715 = vrot.lane.b32.xlu0 %v1325, 16
        %v1716 = vpop.permute.xlu0 %1715
        %1717 = vrot.lane.b32.xlu0 %v1348, 16
        %v1718 = vpop.permute.xlu0 %1717
        %1719 = vrot.lane.b32.xlu0 %v1350, 16
        %v1720 = vpop.permute.xlu0 %1719
        %1721 = vrot.lane.b32.xlu0 %v1373, 16
        %v1722 = vpop.permute.xlu0 %1721
        %1723 = vrot.lane.b32.xlu0 %v1375, 16
        %v1724 = vpop.permute.xlu0 %1723
        %1741 = vrot.lane.b32.xlu0 %v1590, 24
        %v1742 = vpop.permute.xlu0 %1741
        %1743 = vrot.lane.b32.xlu0 %v1592, 24
        %v1744 = vpop.permute.xlu0 %1743
        %1745 = vrot.lane.b32.xlu0 %v1615, 24
        %v1746 = vpop.permute.xlu0 %1745
        %1747 = vrot.lane.b32.xlu0 %v1617, 24
        %v1748 = vpop.permute.xlu0 %1747
        %1749 = vrot.lane.b32.xlu0 %v1640, 24
        %v1750 = vpop.permute.xlu0 %1749
        %1751 = vrot.lane.b32.xlu0 %v1642, 24
        %v1752 = vpop.permute.xlu0 %1751
        %1753 = vrot.lane.b32.xlu0 %v1665, 24
        %v1754 = vpop.permute.xlu0 %1753
        %1755 = vrot.lane.b32.xlu0 %v1667, 24
        %v1756 = vpop.permute.xlu0 %1755
        %v1765 = vsel %vm479, %v714, %v1678
        %v1766 = vsel %vm479, %v716, %v1680
        %v1767 = vsel %vm479, %v739, %v1682
        %v1768 = vsel %vm479, %v741, %v1684
        %v1769 = vsel %vm479, %v764, %v1686
        %v1770 = vsel %vm479, %v766, %v1688
        %v1771 = vsel %vm479, %v789, %v1690
        %v1772 = vsel %vm479, %v791, %v1692
        %v1773 = vsel %vm596, %v1765, %v1710
        %v1774 = vsel %vm596, %v1766, %v1712
        %v1775 = vsel %vm596, %v1767, %v1714
        %v1776 = vsel %vm596, %v1768, %v1716
        %v1777 = vsel %vm596, %v1769, %v1718
        %v1778 = vsel %vm596, %v1770, %v1720
        %v1779 = vsel %vm596, %v1771, %v1722
        %v1780 = vsel %vm596, %v1772, %v1724
        %vm1781 = vcmask 195584
        %v1782 = vsel %vm1781, %v1773, %v1742
        %v1783 = vsel %vm1781, %v1774, %v1744
        %v1784 = vsel %vm1781, %v1775, %v1746
        %v1785 = vsel %vm1781, %v1776, %v1748
        %v1786 = vsel %vm1781, %v1777, %v1750
        %v1787 = vsel %vm1781, %v1778, %v1752
        %v1788 = vsel %vm1781, %v1779, %v1754
        %v1789 = vsel %vm1781, %v1780, %v1756
        %v1790 = vld [vmem:[#allocation5] sm:$0x3f]
        %v1791 = vld [vmem:[%s3] sm:$0xf]
        %v1792 = vld [vmem:[%s3 + $0x4] sm:$0xf]
        %v1793 = vld [vmem:[%s3 + $0x8] sm:$0xf]
        %v1794 = vld [vmem:[%s3 + $0xc] sm:$0xf]
        %v1795 = vpack.c.bf16 %v1783, %v1782
        %v1796 = vpack.c.bf16 %v1785, %v1784
        %v1797 = vpack.c.bf16 %v1787, %v1786
        %v1798 = vpack.c.bf16 %v1789, %v1788
        %v1803 = vunpack.c.l.b16 %v1791
        %v1804 = vunpack.c.l.b16 %v1792
        %v1805 = vunpack.c.l.b16 %v1793
        %v1806 = vunpack.c.l.b16 %v1794
        %v1807 = vpack.c.b16 %v1804, %v1803
        %v1808 = vpack.c.b16 %v1806, %v1805
        %v1812 = vsel %vm401, %v1795, 0
        %v1815 = vsel %vm401, %v1796, 0
        %v1818 = vsel %vm401, %v1797, 0
        %v1821 = vsel %vm401, %v1798, 0
        %1823 = vmatpush.bf16.msra.mxu0 0
        %1824 = vmatpush.bf16.msra.mxu0 0
        %1825 = vmatpush.bf16.msra.mxu0 0
        %1826 = vmatpush.bf16.msra.mxu0 0
        %1827 = vmatpush.bf16.msra.mxu0 0
        %1828 = vmatpush.bf16.msra.mxu0 0
        %1829 = vmatpush.bf16.msra.mxu0 %v1808
        %1830 = vmatpush.bf16.msra.mxu0 %v1807
        %1831 = vmatmul.bf16.gmra.mxu0 %v1812
        %v1832 = vpop.f32.mrf.mxu0
        %v1833 = vadd.f32 0.0, %v1832
        %v1834 = vpop.f32.mrf.mxu0
        %v1835 = vadd.f32 0.0, %v1834
        %1836 = vmatmul.bf16.gmra.mxu0 %v1815
        %v1837 = vpop.f32.mrf.mxu0
        %v1838 = vadd.f32 0.0, %v1837
        %v1839 = vpop.f32.mrf.mxu0
        %v1840 = vadd.f32 0.0, %v1839
        %1841 = vmatmul.bf16.gmra.mxu0 %v1818
        %v1842 = vpop.f32.mrf.mxu0
        %v1843 = vadd.f32 0.0, %v1842
        %v1844 = vpop.f32.mrf.mxu0
        %v1845 = vadd.f32 0.0, %v1844
        %1846 = vmatmul.bf16.gmra.mxu0 %v1821
        %v1847 = vpop.f32.mrf.mxu0
        %v1848 = vadd.f32 0.0, %v1847
        %v1849 = vpop.f32.mrf.mxu0
        %v1850 = vadd.f32 0.0, %v1849
        %1851 = vdwg.mxu0
        %v1852 = vadd.f32 %v353, %v1833
        %v1853 = vadd.f32 %v354, %v1835
        %v1854 = vadd.f32 %v355, %v1838
        %v1855 = vadd.f32 %v356, %v1840
        %v1856 = vadd.f32 %v357, %v1843
        %v1857 = vadd.f32 %v358, %v1845
        %v1858 = vadd.f32 %v359, %v1848
        %v1859 = vadd.f32 %v360, %v1850
        %v1860 = vperm.slane %v1790, 0
        %v1861 = vadd.f32 %v1852, %v1860
        %v1862 = vadd.f32 %v1853, %v1860
        %v1863 = vadd.f32 %v1854, %v1860
        %v1864 = vadd.f32 %v1855, %v1860
        %v1865 = vadd.f32 %v1856, %v1860
        %v1866 = vadd.f32 %v1857, %v1860
        %v1867 = vadd.f32 %v1858, %v1860
        %v1868 = vadd.f32 %v1859, %v1860
        %v1869 = vsel %vm401, %v1861, 0.0
        %1870 = vadd.xlane.f32.xlu0 %v1869
        %v1871 = vpop.xlane.xlu0 %1870
        %v1872 = vsel %vm401, %v1862, 0.0
        %1873 = vadd.xlane.f32.xlu0 %v1872
        %v1874 = vpop.xlane.xlu0 %1873
        %v1875 = vsel %vm401, %v1863, 0.0
        %1876 = vadd.xlane.f32.xlu0 %v1875
        %v1877 = vpop.xlane.xlu0 %1876
        %v1878 = vsel %vm401, %v1864, 0.0
        %1879 = vadd.xlane.f32.xlu0 %v1878
        %v1880 = vpop.xlane.xlu0 %1879
        %v1881 = vsel %vm401, %v1865, 0.0
        %1882 = vadd.xlane.f32.xlu0 %v1881
        %v1883 = vpop.xlane.xlu0 %1882
        %v1884 = vsel %vm401, %v1866, 0.0
        %1885 = vadd.xlane.f32.xlu0 %v1884
        %v1886 = vpop.xlane.xlu0 %1885
        %v1887 = vsel %vm401, %v1867, 0.0
        %1888 = vadd.xlane.f32.xlu0 %v1887
        %v1889 = vpop.xlane.xlu0 %1888
        %v1890 = vsel %vm401, %v1868, 0.0
        %1891 = vadd.xlane.f32.xlu0 %v1890
        %v1892 = vpop.xlane.xlu0 %1891
        %v1893 = vrcp.pop 32.0
        %v1894 = vmul.f32 32.0, %v1893
        %v1895 = vsub.f32 1.0, %v1894
        %v1896 = vmul.f32 %v1893, %v1895
        %v1897 = vadd.f32 %v1893, %v1896
        %vm1898 = vweird.f32 %v1893
        %v1899 = vsel %vm1898, %v1893, %v1897
        %v1900 = vmul.f32 %v1871, %v1899
        %v1901 = vmul.f32 %v1874, %v1899
        %v1902 = vmul.f32 %v1877, %v1899
        %v1903 = vmul.f32 %v1880, %v1899
        %v1904 = vmul.f32 %v1883, %v1899
        %v1905 = vmul.f32 %v1886, %v1899
        %v1906 = vmul.f32 %v1889, %v1899
        %v1907 = vmul.f32 %v1892, %v1899
        %v1908 = vmul.f32 %v1861, %v1861
        %v1909 = vmul.f32 %v1862, %v1862
        %v1910 = vmul.f32 %v1863, %v1863
        %v1911 = vmul.f32 %v1864, %v1864
        %v1912 = vmul.f32 %v1865, %v1865
        %v1913 = vmul.f32 %v1866, %v1866
        %v1914 = vmul.f32 %v1867, %v1867
        %v1915 = vmul.f32 %v1868, %v1868
        %v1916 = vsel %vm401, %v1908, 0.0
        %1917 = vadd.xlane.f32.xlu0 %v1916
        %v1918 = vpop.xlane.xlu0 %1917
        %v1919 = vsel %vm401, %v1909, 0.0
        %1920 = vadd.xlane.f32.xlu0 %v1919
        %v1921 = vpop.xlane.xlu0 %1920
        %v1922 = vsel %vm401, %v1910, 0.0
        %1923 = vadd.xlane.f32.xlu0 %v1922
        %v1924 = vpop.xlane.xlu0 %1923
        %v1925 = vsel %vm401, %v1911, 0.0
        %1926 = vadd.xlane.f32.xlu0 %v1925
        %v1927 = vpop.xlane.xlu0 %1926
        %v1928 = vsel %vm401, %v1912, 0.0
        %1929 = vadd.xlane.f32.xlu0 %v1928
        %v1930 = vpop.xlane.xlu0 %1929
        %v1931 = vsel %vm401, %v1913, 0.0
        %1932 = vadd.xlane.f32.xlu0 %v1931
        %v1933 = vpop.xlane.xlu0 %1932
        %v1934 = vsel %vm401, %v1914, 0.0
        %1935 = vadd.xlane.f32.xlu0 %v1934
        %v1936 = vpop.xlane.xlu0 %1935
        %v1937 = vsel %vm401, %v1915, 0.0
        %1938 = vadd.xlane.f32.xlu0 %v1937
        %v1939 = vpop.xlane.xlu0 %1938
        %v1940 = vmul.f32 %v1918, %v1899
        %v1941 = vmul.f32 %v1921, %v1899
        %v1942 = vmul.f32 %v1924, %v1899
        %v1943 = vmul.f32 %v1927, %v1899
        %v1944 = vmul.f32 %v1930, %v1899
        %v1945 = vmul.f32 %v1933, %v1899
        %v1946 = vmul.f32 %v1936, %v1899
        %v1947 = vmul.f32 %v1939, %v1899
        %v1948 = vmul.f32 %v1900, %v1900
        %v1949 = vmul.f32 %v1901, %v1901
        %v1950 = vmul.f32 %v1902, %v1902
        %v1951 = vmul.f32 %v1903, %v1903
        %v1952 = vmul.f32 %v1904, %v1904
        %v1953 = vmul.f32 %v1905, %v1905
        %v1954 = vmul.f32 %v1906, %v1906
        %v1955 = vmul.f32 %v1907, %v1907
        %v1956 = vsub.f32 %v1940, %v1948
        %v1957 = vsub.f32 %v1941, %v1949
        %v1958 = vsub.f32 %v1942, %v1950
        %v1959 = vsub.f32 %v1943, %v1951
        %v1960 = vsub.f32 %v1944, %v1952
        %v1961 = vsub.f32 %v1945, %v1953
        %v1962 = vsub.f32 %v1946, %v1954
        %v1963 = vsub.f32 %v1947, %v1955
        %v1964 = vsub.f32 %v1861, %v1900
        %v1965 = vsub.f32 %v1862, %v1901
        %v1966 = vsub.f32 %v1863, %v1902
        %v1967 = vsub.f32 %v1864, %v1903
        %v1968 = vsub.f32 %v1865, %v1904
        %v1969 = vsub.f32 %v1866, %v1905
        %v1970 = vsub.f32 %v1867, %v1906
        %v1971 = vsub.f32 %v1868, %v1907
        %v1972 = vadd.f32 %v1956, 1e-05
        %v1973 = vadd.f32 %v1957, 1e-05
        %v1974 = vadd.f32 %v1958, 1e-05
        %v1975 = vadd.f32 %v1959, 1e-05
        %v1976 = vadd.f32 %v1960, 1e-05
        %v1977 = vadd.f32 %v1961, 1e-05
        %v1978 = vadd.f32 %v1962, 1e-05
        %v1979 = vadd.f32 %v1963, 1e-05
        %v1980 = vrsqrt.pop %v1972
        %v1981 = vmul.f32 %v1980, %v1972
        %v1982 = vmul.f32 %v1981, %v1980
        %v1983 = vmul.f32 0.5, %v1982
        %v1984 = vsub.f32 1.5, %v1983
        %v1985 = vmul.f32 %v1980, %v1984
        %vm1986 = vweird.f32 %v1972
        %vm1987 = vweird.f32 %v1980
        %vm1988 = vmor %vm1986, %vm1987
        %v1989 = vsel %vm1988, %v1980, %v1985
        %v1990 = vrsqrt.pop %v1973
        %v1991 = vmul.f32 %v1990, %v1973
        %v1992 = vmul.f32 %v1991, %v1990
        %v1993 = vmul.f32 0.5, %v1992
        %v1994 = vsub.f32 1.5, %v1993
        %v1995 = vmul.f32 %v1990, %v1994
        %vm1996 = vweird.f32 %v1973
        %vm1997 = vweird.f32 %v1990
        %vm1998 = vmor %vm1996, %vm1997
        %v1999 = vsel %vm1998, %v1990, %v1995
        %v2000 = vrsqrt.pop %v1974
        %v2001 = vmul.f32 %v2000, %v1974
        %v2002 = vmul.f32 %v2001, %v2000
        %v2003 = vmul.f32 0.5, %v2002
        %v2004 = vsub.f32 1.5, %v2003
        %v2005 = vmul.f32 %v2000, %v2004
        %vm2006 = vweird.f32 %v1974
        %vm2007 = vweird.f32 %v2000
        %vm2008 = vmor %vm2006, %vm2007
        %v2009 = vsel %vm2008, %v2000, %v2005
        %v2010 = vrsqrt.pop %v1975
        %v2011 = vmul.f32 %v2010, %v1975
        %v2012 = vmul.f32 %v2011, %v2010
        %v2013 = vmul.f32 0.5, %v2012
        %v2014 = vsub.f32 1.5, %v2013
        %v2015 = vmul.f32 %v2010, %v2014
        %vm2016 = vweird.f32 %v1975
        %vm2017 = vweird.f32 %v2010
        %vm2018 = vmor %vm2016, %vm2017
        %v2019 = vsel %vm2018, %v2010, %v2015
        %v2020 = vrsqrt.pop %v1976
        %v2021 = vmul.f32 %v2020, %v1976
        %v2022 = vmul.f32 %v2021, %v2020
        %v2023 = vmul.f32 0.5, %v2022
        %v2024 = vsub.f32 1.5, %v2023
        %v2025 = vmul.f32 %v2020, %v2024
        %vm2026 = vweird.f32 %v1976
        %vm2027 = vweird.f32 %v2020
        %vm2028 = vmor %vm2026, %vm2027
        %v2029 = vsel %vm2028, %v2020, %v2025
        %v2030 = vrsqrt.pop %v1977
        %v2031 = vmul.f32 %v2030, %v1977
        %v2032 = vmul.f32 %v2031, %v2030
        %v2033 = vmul.f32 0.5, %v2032
        %v2034 = vsub.f32 1.5, %v2033
        %v2035 = vmul.f32 %v2030, %v2034
        %vm2036 = vweird.f32 %v1977
        %vm2037 = vweird.f32 %v2030
        %vm2038 = vmor %vm2036, %vm2037
        %v2039 = vsel %vm2038, %v2030, %v2035
        %v2040 = vrsqrt.pop %v1978
        %v2041 = vmul.f32 %v2040, %v1978
        %v2042 = vmul.f32 %v2041, %v2040
        %v2043 = vmul.f32 0.5, %v2042
        %v2044 = vsub.f32 1.5, %v2043
        %v2045 = vmul.f32 %v2040, %v2044
        %vm2046 = vweird.f32 %v1978
        %vm2047 = vweird.f32 %v2040
        %vm2048 = vmor %vm2046, %vm2047
        %v2049 = vsel %vm2048, %v2040, %v2045
        %v2050 = vrsqrt.pop %v1979
        %v2051 = vmul.f32 %v2050, %v1979
        %v2052 = vmul.f32 %v2051, %v2050
        %v2053 = vmul.f32 0.5, %v2052
        %v2054 = vsub.f32 1.5, %v2053
        %v2055 = vmul.f32 %v2050, %v2054
        %vm2056 = vweird.f32 %v1979
        %vm2057 = vweird.f32 %v2050
        %vm2058 = vmor %vm2056, %vm2057
        %v2059 = vsel %vm2058, %v2050, %v2055
        %v2060 = vmul.f32 %v1964, %v1989
        %v2061 = vmul.f32 %v1965, %v1999
        %v2062 = vmul.f32 %v1966, %v2009
        %v2063 = vmul.f32 %v1967, %v2019
        %v2064 = vmul.f32 %v1968, %v2029
        %v2065 = vmul.f32 %v1969, %v2039
        %v2066 = vmul.f32 %v1970, %v2049
        %v2067 = vmul.f32 %v1971, %v2059
        %v2068 = vperm.slane %v1790, 1
        %v2069 = vmul.f32 %v2060, %v2068
        %v2070 = vmul.f32 %v2061, %v2068
        %v2071 = vmul.f32 %v2062, %v2068
        %v2072 = vmul.f32 %v2063, %v2068
        %v2073 = vmul.f32 %v2064, %v2068
        %v2074 = vmul.f32 %v2065, %v2068
        %v2075 = vmul.f32 %v2066, %v2068
        %v2076 = vmul.f32 %v2067, %v2068
        %v2077 = vperm.slane %v1790, 2
        %v2078 = vadd.f32 %v2069, %v2077
        %v2079 = vadd.f32 %v2070, %v2077
        %v2080 = vadd.f32 %v2071, %v2077
        %v2081 = vadd.f32 %v2072, %v2077
        %v2082 = vadd.f32 %v2073, %v2077
        %v2083 = vadd.f32 %v2074, %v2077
        %v2084 = vadd.f32 %v2075, %v2077
        %v2085 = vadd.f32 %v2076, %v2077
        %v2086 = vld [vmem:[%s4] sm:$0xf]
        %v2087 = vld [vmem:[%s4 + $0x4] sm:$0xf]
        %v2088 = vld [vmem:[%s4 + $0x8] sm:$0xf]
        %v2089 = vld [vmem:[%s4 + $0xc] sm:$0xf]
        %v2090 = vpack.c.bf16 %v2079, %v2078
        %v2091 = vpack.c.bf16 %v2081, %v2080
        %v2092 = vpack.c.bf16 %v2083, %v2082
        %v2093 = vpack.c.bf16 %v2085, %v2084
        %v2094 = vld [vmem:[%s5] sm:$0x1]
        %v2096 = vperm.slane %v2094, 0
        %v2102 = vunpack.c.l.b16 %v2086
        %v2103 = vunpack.c.l.b16 %v2087
        %v2104 = vunpack.c.l.b16 %v2088
        %v2105 = vunpack.c.l.b16 %v2089
        %v2106 = vpack.c.b16 %v2103, %v2102
        %v2107 = vpack.c.b16 %v2105, %v2104
        %v2111 = vsel %vm401, %v2090, 0
        %v2114 = vsel %vm401, %v2091, 0
        %v2117 = vsel %vm401, %v2092, 0
        %v2120 = vsel %vm401, %v2093, 0
        %2122 = vmatpush.bf16.msra.mxu0 0
        %2123 = vmatpush.bf16.msra.mxu0 0
        %2124 = vmatpush.bf16.msra.mxu0 0
        %2125 = vmatpush.bf16.msra.mxu0 0
        %2126 = vmatpush.bf16.msra.mxu0 0
        %2127 = vmatpush.bf16.msra.mxu0 0
        %2128 = vmatpush.bf16.msra.mxu0 %v2107
        %2129 = vmatpush.bf16.msra.mxu0 %v2106
        %2130 = vmatmul.bf16.gmra.mxu0 %v2111
        %v2131 = vpop.f32.mrf.mxu0
        %v2132 = vadd.f32 %v2096, %v2131
        %v2133 = vpop.f32.mrf.mxu0
        %v2134 = vadd.f32 %v2096, %v2133
        %2135 = vmatmul.bf16.gmra.mxu0 %v2114
        %v2136 = vpop.f32.mrf.mxu0
        %v2137 = vadd.f32 %v2096, %v2136
        %v2138 = vpop.f32.mrf.mxu0
        %v2139 = vadd.f32 %v2096, %v2138
        %2140 = vmatmul.bf16.gmra.mxu0 %v2117
        %v2141 = vpop.f32.mrf.mxu0
        %v2142 = vadd.f32 %v2096, %v2141
        %v2143 = vpop.f32.mrf.mxu0
        %v2144 = vadd.f32 %v2096, %v2143
        %2145 = vmatmul.bf16.gmra.mxu0 %v2120
        %v2146 = vpop.f32.mrf.mxu0
        %v2147 = vadd.f32 %v2096, %v2146
        %v2148 = vpop.f32.mrf.mxu0
        %v2149 = vadd.f32 %v2096, %v2148
        %2150 = vdwg.mxu0
        %v2151 = vmax.f32 %v2132, 0.0
        %v2152 = vmax.f32 %v2134, 0.0
        %v2153 = vmax.f32 %v2137, 0.0
        %v2154 = vmax.f32 %v2139, 0.0
        %v2155 = vmax.f32 %v2142, 0.0
        %v2156 = vmax.f32 %v2144, 0.0
        %v2157 = vmax.f32 %v2147, 0.0
        %v2158 = vmax.f32 %v2149, 0.0
        %v2159 = vld [vmem:[%s6] sm:$0xf]
        %v2160 = vld [vmem:[%s6 + $0x4] sm:$0xf]
        %v2161 = vld [vmem:[%s6 + $0x8] sm:$0xf]
        %v2162 = vld [vmem:[%s6 + $0xc] sm:$0xf]
        %v2163 = vld [vmem:[%s6 + $0x10] sm:$0xf]
        %v2164 = vld [vmem:[%s6 + $0x14] sm:$0xf]
        %v2165 = vld [vmem:[%s6 + $0x18] sm:$0xf]
        %v2166 = vld [vmem:[%s6 + $0x1c] sm:$0xf]
        %v2167 = vpack.c.bf16 %v2152, %v2151
        %v2168 = vpack.c.bf16 %v2154, %v2153
        %v2169 = vpack.c.bf16 %v2156, %v2155
        %v2170 = vpack.c.bf16 %v2158, %v2157
        %v2179 = vunpack.c.l.b16 %v2159
        %v2180 = vunpack.c.l.b16 %v2160
        %v2181 = vunpack.c.l.b16 %v2161
        %v2182 = vunpack.c.l.b16 %v2162
        %v2183 = vunpack.c.l.b16 %v2163
        %v2184 = vunpack.c.l.b16 %v2164
        %v2185 = vunpack.c.l.b16 %v2165
        %v2186 = vunpack.c.l.b16 %v2166
        %v2187 = vpack.c.b16 %v2180, %v2179
        %v2188 = vpack.c.b16 %v2182, %v2181
        %v2189 = vpack.c.b16 %v2184, %v2183
        %v2190 = vpack.c.b16 %v2186, %v2185
        %vm2195 = vcmask 523264
        %v2197 = vsel %vm2195, %v2167, 0
        %v2200 = vsel %vm2195, %v2168, 0
        %v2203 = vsel %vm2195, %v2169, 0
        %v2206 = vsel %vm2195, %v2170, 0
        %2208 = vmatpush.bf16.msra.mxu0 0
        %2209 = vmatpush.bf16.msra.mxu0 0
        %2210 = vmatpush.bf16.msra.mxu0 0
        %2211 = vmatpush.bf16.msra.mxu0 0
        %2212 = vmatpush.bf16.msra.mxu0 %v2190
        %2213 = vmatpush.bf16.msra.mxu0 %v2189
        %2214 = vmatpush.bf16.msra.mxu0 %v2188
        %2215 = vmatpush.bf16.msra.mxu0 %v2187
        %2216 = vmatmul.bf16.gmra.mxu0 %v2197
        %v2217 = vpop.f32.mrf.mxu0
        %v2218 = vadd.f32 0.0, %v2217
        %v2219 = vpop.f32.mrf.mxu0
        %v2220 = vadd.f32 0.0, %v2219
        %2221 = vmatmul.bf16.gmra.mxu0 %v2200
        %v2222 = vpop.f32.mrf.mxu0
        %v2223 = vadd.f32 0.0, %v2222
        %v2224 = vpop.f32.mrf.mxu0
        %v2225 = vadd.f32 0.0, %v2224
        %2226 = vmatmul.bf16.gmra.mxu0 %v2203
        %v2227 = vpop.f32.mrf.mxu0
        %v2228 = vadd.f32 0.0, %v2227
        %v2229 = vpop.f32.mrf.mxu0
        %v2230 = vadd.f32 0.0, %v2229
        %2231 = vmatmul.bf16.gmra.mxu0 %v2206
        %v2232 = vpop.f32.mrf.mxu0
        %v2233 = vadd.f32 0.0, %v2232
        %v2234 = vpop.f32.mrf.mxu0
        %v2235 = vadd.f32 0.0, %v2234
        %2236 = vdwg.mxu0
        %v2237 = vadd.f32 %v2078, %v2218
        %v2238 = vadd.f32 %v2079, %v2220
        %v2239 = vadd.f32 %v2080, %v2223
        %v2240 = vadd.f32 %v2081, %v2225
        %v2241 = vadd.f32 %v2082, %v2228
        %v2242 = vadd.f32 %v2083, %v2230
        %v2243 = vadd.f32 %v2084, %v2233
        %v2244 = vadd.f32 %v2085, %v2235
        %v2245 = vperm.slane %v1790, 3
        %v2246 = vadd.f32 %v2237, %v2245
        %v2247 = vadd.f32 %v2238, %v2245
        %v2248 = vadd.f32 %v2239, %v2245
        %v2249 = vadd.f32 %v2240, %v2245
        %v2250 = vadd.f32 %v2241, %v2245
        %v2251 = vadd.f32 %v2242, %v2245
        %v2252 = vadd.f32 %v2243, %v2245
        %v2253 = vadd.f32 %v2244, %v2245
        %v2254 = vsel %vm401, %v2246, 0.0
        %2255 = vadd.xlane.f32.xlu0 %v2254
        %v2256 = vpop.xlane.xlu0 %2255
        %v2257 = vsel %vm401, %v2247, 0.0
        %2258 = vadd.xlane.f32.xlu0 %v2257
        %v2259 = vpop.xlane.xlu0 %2258
        %v2260 = vsel %vm401, %v2248, 0.0
        %2261 = vadd.xlane.f32.xlu0 %v2260
        %v2262 = vpop.xlane.xlu0 %2261
        %v2263 = vsel %vm401, %v2249, 0.0
        %2264 = vadd.xlane.f32.xlu0 %v2263
        %v2265 = vpop.xlane.xlu0 %2264
        %v2266 = vsel %vm401, %v2250, 0.0
        %2267 = vadd.xlane.f32.xlu0 %v2266
        %v2268 = vpop.xlane.xlu0 %2267
        %v2269 = vsel %vm401, %v2251, 0.0
        %2270 = vadd.xlane.f32.xlu0 %v2269
        %v2271 = vpop.xlane.xlu0 %2270
        %v2272 = vsel %vm401, %v2252, 0.0
        %2273 = vadd.xlane.f32.xlu0 %v2272
        %v2274 = vpop.xlane.xlu0 %2273
        %v2275 = vsel %vm401, %v2253, 0.0
        %2276 = vadd.xlane.f32.xlu0 %v2275
        %v2277 = vpop.xlane.xlu0 %2276
        %v2278 = vmul.f32 %v2256, %v1899
        %v2279 = vmul.f32 %v2259, %v1899
        %v2280 = vmul.f32 %v2262, %v1899
        %v2281 = vmul.f32 %v2265, %v1899
        %v2282 = vmul.f32 %v2268, %v1899
        %v2283 = vmul.f32 %v2271, %v1899
        %v2284 = vmul.f32 %v2274, %v1899
        %v2285 = vmul.f32 %v2277, %v1899
        %v2286 = vmul.f32 %v2246, %v2246
        %v2287 = vmul.f32 %v2247, %v2247
        %v2288 = vmul.f32 %v2248, %v2248
        %v2289 = vmul.f32 %v2249, %v2249
        %v2290 = vmul.f32 %v2250, %v2250
        %v2291 = vmul.f32 %v2251, %v2251
        %v2292 = vmul.f32 %v2252, %v2252
        %v2293 = vmul.f32 %v2253, %v2253
        %v2294 = vsel %vm401, %v2286, 0.0
        %2295 = vadd.xlane.f32.xlu0 %v2294
        %v2296 = vpop.xlane.xlu0 %2295
        %v2297 = vsel %vm401, %v2287, 0.0
        %2298 = vadd.xlane.f32.xlu0 %v2297
        %v2299 = vpop.xlane.xlu0 %2298
        %v2300 = vsel %vm401, %v2288, 0.0
        %2301 = vadd.xlane.f32.xlu0 %v2300
        %v2302 = vpop.xlane.xlu0 %2301
        %v2303 = vsel %vm401, %v2289, 0.0
        %2304 = vadd.xlane.f32.xlu0 %v2303
        %v2305 = vpop.xlane.xlu0 %2304
        %v2306 = vsel %vm401, %v2290, 0.0
        %2307 = vadd.xlane.f32.xlu0 %v2306
        %v2308 = vpop.xlane.xlu0 %2307
        %v2309 = vsel %vm401, %v2291, 0.0
        %2310 = vadd.xlane.f32.xlu0 %v2309
        %v2311 = vpop.xlane.xlu0 %2310
        %v2312 = vsel %vm401, %v2292, 0.0
        %2313 = vadd.xlane.f32.xlu0 %v2312
        %v2314 = vpop.xlane.xlu0 %2313
        %v2315 = vsel %vm401, %v2293, 0.0
        %2316 = vadd.xlane.f32.xlu0 %v2315
        %v2317 = vpop.xlane.xlu0 %2316
        %v2318 = vmul.f32 %v2296, %v1899
        %v2319 = vmul.f32 %v2299, %v1899
        %v2320 = vmul.f32 %v2302, %v1899
        %v2321 = vmul.f32 %v2305, %v1899
        %v2322 = vmul.f32 %v2308, %v1899
        %v2323 = vmul.f32 %v2311, %v1899
        %v2324 = vmul.f32 %v2314, %v1899
        %v2325 = vmul.f32 %v2317, %v1899
        %v2326 = vmul.f32 %v2278, %v2278
        %v2327 = vmul.f32 %v2279, %v2279
        %v2328 = vmul.f32 %v2280, %v2280
        %v2329 = vmul.f32 %v2281, %v2281
        %v2330 = vmul.f32 %v2282, %v2282
        %v2331 = vmul.f32 %v2283, %v2283
        %v2332 = vmul.f32 %v2284, %v2284
        %v2333 = vmul.f32 %v2285, %v2285
        %v2334 = vsub.f32 %v2318, %v2326
        %v2335 = vsub.f32 %v2319, %v2327
        %v2336 = vsub.f32 %v2320, %v2328
        %v2337 = vsub.f32 %v2321, %v2329
        %v2338 = vsub.f32 %v2322, %v2330
        %v2339 = vsub.f32 %v2323, %v2331
        %v2340 = vsub.f32 %v2324, %v2332
        %v2341 = vsub.f32 %v2325, %v2333
        %v2342 = vsub.f32 %v2246, %v2278
        %v2343 = vsub.f32 %v2247, %v2279
        %v2344 = vsub.f32 %v2248, %v2280
        %v2345 = vsub.f32 %v2249, %v2281
        %v2346 = vsub.f32 %v2250, %v2282
        %v2347 = vsub.f32 %v2251, %v2283
        %v2348 = vsub.f32 %v2252, %v2284
        %v2349 = vsub.f32 %v2253, %v2285
        %v2350 = vadd.f32 %v2334, 1e-05
        %v2351 = vadd.f32 %v2335, 1e-05
        %v2352 = vadd.f32 %v2336, 1e-05
        %v2353 = vadd.f32 %v2337, 1e-05
        %v2354 = vadd.f32 %v2338, 1e-05
        %v2355 = vadd.f32 %v2339, 1e-05
        %v2356 = vadd.f32 %v2340, 1e-05
        %v2357 = vadd.f32 %v2341, 1e-05
        %v2358 = vrsqrt.pop %v2350
        %v2359 = vmul.f32 %v2358, %v2350
        %v2360 = vmul.f32 %v2359, %v2358
        %v2361 = vmul.f32 0.5, %v2360
        %v2362 = vsub.f32 1.5, %v2361
        %v2363 = vmul.f32 %v2358, %v2362
        %vm2364 = vweird.f32 %v2350
        %vm2365 = vweird.f32 %v2358
        %vm2366 = vmor %vm2364, %vm2365
        %v2367 = vsel %vm2366, %v2358, %v2363
        %v2368 = vrsqrt.pop %v2351
        %v2369 = vmul.f32 %v2368, %v2351
        %v2370 = vmul.f32 %v2369, %v2368
        %v2371 = vmul.f32 0.5, %v2370
        %v2372 = vsub.f32 1.5, %v2371
        %v2373 = vmul.f32 %v2368, %v2372
        %vm2374 = vweird.f32 %v2351
        %vm2375 = vweird.f32 %v2368
        %vm2376 = vmor %vm2374, %vm2375
        %v2377 = vsel %vm2376, %v2368, %v2373
        %v2378 = vrsqrt.pop %v2352
        %v2379 = vmul.f32 %v2378, %v2352
        %v2380 = vmul.f32 %v2379, %v2378
        %v2381 = vmul.f32 0.5, %v2380
        %v2382 = vsub.f32 1.5, %v2381
        %v2383 = vmul.f32 %v2378, %v2382
        %vm2384 = vweird.f32 %v2352
        %vm2385 = vweird.f32 %v2378
        %vm2386 = vmor %vm2384, %vm2385
        %v2387 = vsel %vm2386, %v2378, %v2383
        %v2388 = vrsqrt.pop %v2353
        %v2389 = vmul.f32 %v2388, %v2353
        %v2390 = vmul.f32 %v2389, %v2388
        %v2391 = vmul.f32 0.5, %v2390
        %v2392 = vsub.f32 1.5, %v2391
        %v2393 = vmul.f32 %v2388, %v2392
        %vm2394 = vweird.f32 %v2353
        %vm2395 = vweird.f32 %v2388
        %vm2396 = vmor %vm2394, %vm2395
        %v2397 = vsel %vm2396, %v2388, %v2393
        %v2398 = vrsqrt.pop %v2354
        %v2399 = vmul.f32 %v2398, %v2354
        %v2400 = vmul.f32 %v2399, %v2398
        %v2401 = vmul.f32 0.5, %v2400
        %v2402 = vsub.f32 1.5, %v2401
        %v2403 = vmul.f32 %v2398, %v2402
        %vm2404 = vweird.f32 %v2354
        %vm2405 = vweird.f32 %v2398
        %vm2406 = vmor %vm2404, %vm2405
        %v2407 = vsel %vm2406, %v2398, %v2403
        %v2408 = vrsqrt.pop %v2355
        %v2409 = vmul.f32 %v2408, %v2355
        %v2410 = vmul.f32 %v2409, %v2408
        %v2411 = vmul.f32 0.5, %v2410
        %v2412 = vsub.f32 1.5, %v2411
        %v2413 = vmul.f32 %v2408, %v2412
        %vm2414 = vweird.f32 %v2355
        %vm2415 = vweird.f32 %v2408
        %vm2416 = vmor %vm2414, %vm2415
        %v2417 = vsel %vm2416, %v2408, %v2413
        %v2418 = vrsqrt.pop %v2356
        %v2419 = vmul.f32 %v2418, %v2356
        %v2420 = vmul.f32 %v2419, %v2418
        %v2421 = vmul.f32 0.5, %v2420
        %v2422 = vsub.f32 1.5, %v2421
        %v2423 = vmul.f32 %v2418, %v2422
        %vm2424 = vweird.f32 %v2356
        %vm2425 = vweird.f32 %v2418
        %vm2426 = vmor %vm2424, %vm2425
        %v2427 = vsel %vm2426, %v2418, %v2423
        %v2428 = vrsqrt.pop %v2357
        %v2429 = vmul.f32 %v2428, %v2357
        %v2430 = vmul.f32 %v2429, %v2428
        %v2431 = vmul.f32 0.5, %v2430
        %v2432 = vsub.f32 1.5, %v2431
        %v2433 = vmul.f32 %v2428, %v2432
        %vm2434 = vweird.f32 %v2357
        %vm2435 = vweird.f32 %v2428
        %vm2436 = vmor %vm2434, %vm2435
        %v2437 = vsel %vm2436, %v2428, %v2433
        %v2438 = vmul.f32 %v2342, %v2367
        %v2439 = vmul.f32 %v2343, %v2377
        %v2440 = vmul.f32 %v2344, %v2387
        %v2441 = vmul.f32 %v2345, %v2397
        %v2442 = vmul.f32 %v2346, %v2407
        %v2443 = vmul.f32 %v2347, %v2417
        %v2444 = vmul.f32 %v2348, %v2427
        %v2445 = vmul.f32 %v2349, %v2437
        %v2446 = vperm.slane %v1790, 4
        %v2447 = vmul.f32 %v2438, %v2446
        %v2448 = vmul.f32 %v2439, %v2446
        %v2449 = vmul.f32 %v2440, %v2446
        %v2450 = vmul.f32 %v2441, %v2446
        %v2451 = vmul.f32 %v2442, %v2446
        %v2452 = vmul.f32 %v2443, %v2446
        %v2453 = vmul.f32 %v2444, %v2446
        %v2454 = vmul.f32 %v2445, %v2446
        %v2455 = vperm.slane %v1790, 5
        %v2456 = vadd.f32 %v2447, %v2455
        %v2457 = vadd.f32 %v2448, %v2455
        %v2458 = vadd.f32 %v2449, %v2455
        %v2459 = vadd.f32 %v2450, %v2455
        %v2460 = vadd.f32 %v2451, %v2455
        %v2461 = vadd.f32 %v2452, %v2455
        %v2462 = vadd.f32 %v2453, %v2455
        %v2463 = vadd.f32 %v2454, %v2455
        %v2464 = vpack.c.bf16 %v2456, %v2456
        %v2465 = vpack.c.bf16 %v2457, %v2457
        %v2466 = vpack.c.bf16 %v2458, %v2458
        %v2467 = vpack.c.bf16 %v2459, %v2459
        %v2468 = vpack.c.bf16 %v2460, %v2460
        %v2469 = vpack.c.bf16 %v2461, %v2461
        %v2470 = vpack.c.bf16 %v2462, %v2462
        %v2471 = vpack.c.bf16 %v2463, %v2463
        %vm2472 = vcmask 257024
        %2473 = vst.msk [vmem:[%s341] sm:$0xf] %vm2472, %v2464
        %2474 = vst.msk [vmem:[%s341 + $0x4] sm:$0xf] %vm2472, %v2465
        %2475 = vst.msk [vmem:[%s341 + $0x8] sm:$0xf] %vm2472, %v2466
        %2476 = vst.msk [vmem:[%s341 + $0xc] sm:$0xf] %vm2472, %v2467
        %2477 = vst.msk [vmem:[%s341 + $0x10] sm:$0xf] %vm2472, %v2468
        %2478 = vst.msk [vmem:[%s341 + $0x14] sm:$0xf] %vm2472, %v2469
        %2479 = vst.msk [vmem:[%s341 + $0x18] sm:$0xf] %vm2472, %v2470
        %2480 = vst.msk [vmem:[%s341 + $0x1c] sm:$0xf] %vm2472, %v2471
        %s2481 = sand.u32 %s207, 1
        %s2482 = scalar_lea.sflag [#allocation4], %s2481
        %s2483 = sand.u32 %s207, 1
        %s2484 = smul.addr %s2483, 32
        %s2485 = scalar_lea.vmem [#allocation7], %s2484
        // Predicated region
        $region61: #{tpu_custom_call.1} parent=51 // pred_check
          %p2486 = pneg %p217
        $region62: #{tpu_custom_call.1} parent=51 // pred_check_branch
          %2488 = sbr.rel (%p2486) target = $region64
        $region63: #{tpu_custom_call.1} parent=51 // pred_region
          %s2489 = smul.u32 4, %s26
          %2491 = vsyncadd %s2482, 0
          %s2492 = smul.addr %s2489, 2
          %s2493 = smul.addr %s2492, 4
          %s2494 = scalar_lea.hbm %s8, %s2493
          %s2495 = sshll.u32 %s2485, 4
          %s2496 = int_to_ptr.vmem [resolvable:$true] %s2495
          %s2497 = sshll.u32 %s2494, 4
          %s2498 = int_to_ptr.hbm [resolvable:$true] %s2497
          %2503 = dma.vmem_to_hbm [thread:$0]  %s2496, 512, %s2498, %s2482, 64, 64, 4
        $region64: #{tpu_custom_call.1} parent=51 // pred_fallthru
          _
      $region52: #{tpu_custom_call.1} parent=5 // pred_fallthru
        _
      %p2504 = scmp.le.s32.totalorder 2, %s21
      // Predicated region
      $region65: #{tpu_custom_call.1} parent=5 // pred_check
        %p2505 = pneg %p2504
      $region66: #{tpu_custom_call.1} parent=5 // pred_check_branch
        %2507 = sbr.rel (%p2505) target = $region68
      $region67: #{tpu_custom_call.1} parent=5 // pred_region
        %s2508 = ssub.s32 %s21, 2
        // Predicated region
        $region69: #{tpu_custom_call.1} parent=67 // pred_check
          %p2509 = pneg %p223
        $region70: #{tpu_custom_call.1} parent=67 // pred_check_branch
          %2511 = sbr.rel (%p2509) target = $region72
        $region71: #{tpu_custom_call.1} parent=67 // pred_region
          %s2512 = sand.u32 %s208, 1
          %s2513 = scalar_lea.sflag [#allocation4], %s2512
          %s2514 = sand.u32 %s208, 1
          %s2515 = smul.addr %s2514, 32
          %s2516 = scalar_lea.vmem [#allocation7], %s2515
          %2518 = dma.done %s2513, 512
        $region72: #{tpu_custom_call.1} parent=67 // pred_fallthru
          _
      $region68: #{tpu_custom_call.1} parent=5 // pred_fallthru
        _
    $region6: #{tpu_custom_call.1} parent=1 // loop_footer
      %s25 = sadd.s32 1, %s21
    $region7: #{tpu_custom_call.1} parent=1 // loop_footer_branch
      %20 = sbr.rel target = $region3
    $region8: #{tpu_custom_call.1} parent=1 // loop_exit
      _
    %2519 = vsyncpa [#allocation3], 1
    %s2520 = scalar_lea.sflag [#allocation3], 1
    %2521 = vsyncpa %s2520, 1
    %2522 = vsyncpa [#allocation6], 1
    %2523 = vsyncpa [#allocation4], 1
    %s2524 = scalar_lea.sflag [#allocation4], 1
    %2525 = vsyncpa %s2524, 1

</llo_original>
